<compile_context>
chip_gen: v6e
topology: v6e:2x2x1
jax: 0.10.0
libtpu: 0.0.40
codegen_flags: <defaults>
</compile_context>

<pallas_src>
import functools

import jax
import jax.numpy as jnp
from jax import lax
from jax.experimental import pallas as pl
from jax.experimental.pallas import tpu as pltpu

EPS = 1e-5  # torch.nn.LayerNorm default eps

# Row indices of the packed (10, 1, 128k) vector-parameter table.
(_V_LN1_G, _V_LN1_B, _V_B_PE, _V_LN2_G, _V_LN2_B,
 _V_B1, _V_B2, _V_BP1, _V_BP2, _V_BP3) = range(10)


def _layernorm(x, gamma, beta):
    mu = jnp.mean(x, axis=-1, keepdims=True)
    var = jnp.mean(jnp.square(x - mu), axis=-1, keepdims=True)
    return (x - mu) * lax.rsqrt(var + EPS) * gamma + beta


def _fused_kernel(patches_ref, vecs_ref, w_pe_ref, w1_ref, w2_ref,
                  wp1_ref, wp2_ref, wp3_ref, out_ref,
                  *, P, patch_dim, d_model, n_cls):
    f32 = jnp.float32
    Bb = patches_ref.shape[0]

    def vec(row, width):
        # (1, width) view of one packed 1-D parameter (static leading index,
        # lane slice starting at 0 -> cheap).
        return vecs_ref[row][:, :width]

    # ---- patch embedder: LayerNorm -> Linear -> LayerNorm (on Bb*P rows) ----
    x = patches_ref[...].reshape(Bb * P, patch_dim)          # major-dim merge only
    x = _layernorm(x, vec(_V_LN1_G, patch_dim), vec(_V_LN1_B, patch_dim))
    x = jnp.dot(x, w_pe_ref[...], preferred_element_type=f32) + vec(_V_B_PE, d_model)
    x = _layernorm(x, vec(_V_LN2_G, d_model), vec(_V_LN2_B, d_model))

    # ---- mlp embedder: Linear -> ReLU -> Linear ----
    h = jnp.dot(x, w1_ref[...], preferred_element_type=f32) + vec(_V_B1, 4 * d_model)
    h = jnp.maximum(h, 0.0)
    z = jnp.dot(h, w2_ref[...], preferred_element_type=f32) + vec(_V_B2, d_model)

    # ---- similarity (contract minor dims, no explicit transpose) + softmax ----
    z3 = z.reshape(Bb, P, d_model)                           # major-dim split only
    sim = jnp.einsum('bpd,bqd->bpq', z3, z3, preferred_element_type=f32)
    sim = sim - jnp.max(sim, axis=-1, keepdims=True)
    e = jnp.exp(sim)
    s = e * pl.reciprocal(jnp.sum(e, axis=-1, keepdims=True), approx=False)

    # ---- predictor head, flatten-free via P-term accumulation ----
    # flatten(S_b) @ wp1 == sum_p S_b[p, :] @ wp1[p*P:(p+1)*P, :]
    # wp1_ref holds wp1 reshaped to (P, P, d_model).  Only the (Bb, d_model)
    # accumulator stays live; exact reference FLOPs on the MXU.
    acc = jnp.zeros((Bb, d_model), f32)
    for p in range(P):                                        # static unroll
        acc = acc + jnp.dot(s[:, p, :], wp1_ref[p], preferred_element_type=f32)

    h1 = jnp.maximum(acc + vec(_V_BP1, d_model), 0.0)
    h1 = jnp.dot(h1, wp2_ref[...], preferred_element_type=f32) + vec(_V_BP2, d_model)
    out_ref[...] = (jnp.dot(h1, wp3_ref[...], preferred_element_type=f32)
                    + vec(_V_BP3, n_cls))


def _hw_config():
    """Generation-aware tiling / VMEM budget (safe defaults off-TPU)."""
    try:
        dev = jax.devices()[0]
        kind = dev.device_kind.lower() if dev.platform == "tpu" else ""
    except Exception:  # pragma: no cover - defensive
        kind = ""
    if "v7" in kind or "7x" in kind:     # v7x: 2 TCs/chip, 64 MiB physical VMEM
        return dict(row_cap=128, split_across_cores=True,
                    vmem_bytes=40 * 1024 * 1024)
    if "v6" in kind:                     # v6e: 1 TC, 256-wide MXU, 128 MiB VMEM
        return dict(row_cap=256, split_across_cores=False,
                    vmem_bytes=64 * 1024 * 1024)
    if "v5" in kind:                     # v5e: 1 TC, 128-wide MXU, shortest grid
        return dict(row_cap=128, split_across_cores=False,
                    vmem_bytes=64 * 1024 * 1024)
    return dict(row_cap=128, split_across_cores=False,
                vmem_bytes=32 * 1024 * 1024)


def _choose_batch_tiling(B, P, *, row_cap, split_across_cores):
    """Batch tile Bb (rows per shared matmul = Bb*P) and grid length."""
    bb = max(1, min(B, max(1, row_cap // P)))
    if split_across_cores and B >= 2:
        # Ensure >= 2 grid steps so the "parallel" axis shards over both TCs.
        bb = min(bb, max(1, (B + 1) // 2))
    grid_len = (B + bb - 1) // bb
    return bb, grid_len


def corelnet_softmax_forward(x, params, *, patch_size):
    pw, ph = patch_size                      # (patch_width, patch_height)
    B, C, H, W = x.shape
    gh, gw = H // ph, W // pw
    P = gh * gw
    patch_dim = ph * pw * C
    d_model = params["w_pe"].shape[1]
    n_cls = params["wp3"].shape[1]

    # glue: einops 'b c (h p1) (w p2) -> b (h w) (p1 p2 c)'
    patches = (x.reshape(B, C, gh, ph, gw, pw)
                .transpose(0, 2, 4, 3, 5, 1)
                .reshape(B, P, patch_dim)).astype(jnp.float32)

    # Pack the ten tiny 1-D params into one table (single DMA / VMEM buffer).
    vec_rows = [params[k] for k in ("ln1_g", "ln1_b", "b_pe", "ln2_g", "ln2_b",
                                    "b1", "b2", "bp1", "bp2", "bp3")]
    vmax = pl.cdiv(max(v.shape[-1] for v in vec_rows), 128) * 128
    vecs = jnp.stack([jnp.pad(v.reshape(-1).astype(jnp.float32),
                              (0, vmax - v.shape[-1])) for v in vec_rows])[:, None, :]

    # wp1 reshaped to (P, P, d_model) for the in-kernel accumulation loop.
    wp1_3d = params["wp1"].reshape(P, P, d_model).astype(jnp.float32)

    cfg = _hw_config()
    Bb, G = _choose_batch_tiling(B, P, row_cap=cfg["row_cap"],
                                 split_across_cores=cfg["split_across_cores"])
    B_pad = G * Bb
    if B_pad != B:                           # pad awkward batches, discard later
        patches = jnp.pad(patches, ((0, B_pad - B), (0, 0), (0, 0)))

    kern = functools.partial(_fused_kernel, P=P, patch_dim=patch_dim,
                             d_model=d_model, n_cls=n_cls)

    def full(a):                             # whole-array (grid-invariant) spec
        return pl.BlockSpec(a.shape, lambda b, _nd=a.ndim: (0,) * _nd)

    weights = [vecs,
               params["w_pe"].astype(jnp.float32),
               params["w1"].astype(jnp.float32),
               params["w2"].astype(jnp.float32),
               wp1_3d,
               params["wp2"].astype(jnp.float32),
               params["wp3"].astype(jnp.float32)]

    out = pl.pallas_call(
        kern,
        # 3-D output: last two block dims equal full array dims -> any Bb legal.
        out_shape=jax.ShapeDtypeStruct((G, Bb, n_cls), jnp.float32),
        grid=(G,),
        in_specs=[pl.BlockSpec((Bb, P, patch_dim), lambda b: (b, 0, 0))]
                 + [full(a) for a in weights],
        out_specs=pl.BlockSpec((None, Bb, n_cls), lambda b: (b, 0, 0)),
        compiler_params=pltpu.CompilerParams(
            dimension_semantics=("parallel",),
            vmem_limit_bytes=cfg["vmem_bytes"]),
    )(patches, *weights)
    return out.reshape(B_pad, n_cls)[:B]


def init_params(key, image_shape, patch_size, d_model, num_classes):
    C, Wimg, Himg = image_shape              # (channels, width, height) as in torch __init__
    pw, ph = patch_size
    num_patches = (Wimg // pw) * (Himg // ph)
    patch_dim = pw * ph * C

    def linear(k, fan_in, fan_out):
        lim = 1.0 / jnp.sqrt(jnp.float32(fan_in))
        kw, kb = jax.random.split(k)
        w = jax.random.uniform(kw, (fan_in, fan_out), jnp.float32, -lim, lim)
        b = jax.random.uniform(kb, (1, fan_out), jnp.float32, -lim, lim)
        return w, b

    keys = jax.random.split(key, 6)
    params = {
        "ln1_g": jnp.ones((1, patch_dim), jnp.float32),
        "ln1_b": jnp.zeros((1, patch_dim), jnp.float32),
        "ln2_g": jnp.ones((1, d_model), jnp.float32),
        "ln2_b": jnp.zeros((1, d_model), jnp.float32),
    }
    params["w_pe"], params["b_pe"] = linear(keys[0], patch_dim, d_model)
    params["w1"], params["b1"] = linear(keys[1], d_model, 4 * d_model)
    params["w2"], params["b2"] = linear(keys[2], 4 * d_model, d_model)
    params["wp1"], params["bp1"] = linear(keys[3], num_patches ** 2, d_model)
    params["wp2"], params["bp2"] = linear(keys[4], d_model, d_model)
    params["wp3"], params["bp3"] = linear(keys[5], d_model, num_classes)
    return params


def reference_forward(x, params, patch_size):
    # pure-JAX reference mirroring the PyTorch forward exactly
    pw, ph = patch_size
    B, C, H, W = x.shape
    gh, gw = H // ph, W // pw
    patches = (x.reshape(B, C, gh, ph, gw, pw)
                .transpose(0, 2, 4, 3, 5, 1)
                .reshape(B, gh * gw, ph * pw * C))

    def ln(z, g, b):
        mu = z.mean(-1, keepdims=True)
        var = ((z - mu) ** 2).mean(-1, keepdims=True)
        return (z - mu) / jnp.sqrt(var + EPS) * g + b

    z = ln(patches, params["ln1_g"][0], params["ln1_b"][0])
    z = z @ params["w_pe"] + params["b_pe"][0]
    z = ln(z, params["ln2_g"][0], params["ln2_b"][0])
    z = jnp.maximum(z @ params["w1"] + params["b1"][0], 0.0) @ params["w2"] + params["b2"][0]
    sim = jnp.einsum("bpd,bqd->bpq", z, z)
    sim = jax.nn.softmax(sim, axis=-1)
    flat = sim.reshape(B, -1)
    hh = jnp.maximum(flat @ params["wp1"] + params["bp1"][0], 0.0)
    hh = hh @ params["wp2"] + params["bp2"][0]
    return hh @ params["wp3"] + params["bp3"][0]


if __name__ == "__main__":
    key = jax.random.PRNGKey(0)
    kx, kp = jax.random.split(key)

    # small shapes consistent with the module
    image_shape = (4, 16, 16)   # (channels, width, height)
    patch_size = (4, 4)         # (patch_width, patch_height)
    d_model = 32
    num_classes = 4
    batch = 2

    C, Wimg, Himg = image_shape
    x = jax.random.normal(kx, (batch, C, Himg, Wimg), jnp.float32)  # NCHW, as in PyTorch
    params = init_params(kp, image_shape, patch_size, d_model, num_classes)

    fwd = jax.jit(functools.partial(corelnet_softmax_forward, patch_size=patch_size))
    out = jax.block_until_ready(fwd(x, params))

    ref = reference_forward(x, params, patch_size)
    assert out.shape == (batch, num_classes)
    assert jnp.allclose(out, ref, atol=1e-4, rtol=1e-4), (out, ref)
    print("KERNEL_OK")
</pallas_src>

<mosaic_0001>
module attributes {stable_mosaic.version = 11 : i64} {
  func.func @_fused_kernel(%arg0: i32, %arg1: memref<2x16x64xf32, #tpu.memory_space<vmem>>, %arg2: memref<10x1x128xf32, #tpu.memory_space<vmem>>, %arg3: memref<64x32xf32, #tpu.memory_space<vmem>>, %arg4: memref<32x128xf32, #tpu.memory_space<vmem>>, %arg5: memref<128x32xf32, #tpu.memory_space<vmem>>, %arg6: memref<16x16x32xf32, #tpu.memory_space<vmem>>, %arg7: memref<32x32xf32, #tpu.memory_space<vmem>>, %arg8: memref<32x4xf32, #tpu.memory_space<vmem>>, %arg9: memref<1x2x4xf32, #tpu.memory_space<vmem>>) attributes {dimension_semantics = [#tpu.dimension_semantics<parallel>], iteration_bounds = array<i64: 1>, scalar_prefetch = 0 : i64, scratch_operands = 0 : i64, tpu.core_type = #tpu.core_type<tc>, window_params = [{transform_indices = @transform_0, window_bounds = array<i64: 2, 16, 64>}, {pipeline_mode = #tpu.pipeline_mode<synchronous>, transform_indices = @transform_1, window_bounds = array<i64: 10, 1, 128>}, {pipeline_mode = #tpu.pipeline_mode<synchronous>, transform_indices = @transform_2, window_bounds = array<i64: 64, 32>}, {pipeline_mode = #tpu.pipeline_mode<synchronous>, transform_indices = @transform_3, window_bounds = array<i64: 32, 128>}, {pipeline_mode = #tpu.pipeline_mode<synchronous>, transform_indices = @transform_4, window_bounds = array<i64: 128, 32>}, {pipeline_mode = #tpu.pipeline_mode<synchronous>, transform_indices = @transform_5, window_bounds = array<i64: 16, 16, 32>}, {pipeline_mode = #tpu.pipeline_mode<synchronous>, transform_indices = @transform_6, window_bounds = array<i64: 32, 32>}, {pipeline_mode = #tpu.pipeline_mode<synchronous>, transform_indices = @transform_7, window_bounds = array<i64: 32, 4>}, {transform_indices = @transform_8, window_bounds = array<i64: 1, 2, 4>}]} {
    %c0 = arith.constant 0 : index
    %c0_0 = arith.constant 0 : index
    %c0_1 = arith.constant 0 : index
    %0 = vector.load %arg1[%c0, %c0_0, %c0_1] : memref<2x16x64xf32, #tpu.memory_space<vmem>>, vector<2x16x64xf32>
    %1 = vector.shape_cast %0 : vector<2x16x64xf32> to vector<32x64xf32>
    %c0_2 = arith.constant 0 : index
    %c0_3 = arith.constant 0 : index
    %c0_4 = arith.constant 0 : index
    %2 = vector.load %arg2[%c0_2, %c0_3, %c0_4] : memref<10x1x128xf32, #tpu.memory_space<vmem>>, vector<1x1x128xf32>
    %3 = vector.shape_cast %2 : vector<1x1x128xf32> to vector<1x128xf32>
    %4 = vector.extract_strided_slice %3 {offsets = [0, 0], sizes = [1, 64], strides = [1, 1]} : vector<1x128xf32> to vector<1x64xf32>
    %c1 = arith.constant 1 : index
    %c0_5 = arith.constant 0 : index
    %c0_6 = arith.constant 0 : index
    %5 = vector.load %arg2[%c1, %c0_5, %c0_6] : memref<10x1x128xf32, #tpu.memory_space<vmem>>, vector<1x1x128xf32>
    %6 = vector.shape_cast %5 : vector<1x1x128xf32> to vector<1x128xf32>
    %7 = vector.extract_strided_slice %6 {offsets = [0, 0], sizes = [1, 64], strides = [1, 1]} : vector<1x128xf32> to vector<1x64xf32>
    %cst = arith.constant dense<0.000000e+00> : vector<32xf32>
    %8 = vector.multi_reduction <add>, %1, %cst [1] : vector<32x64xf32> to vector<32xf32>
    %9 = vector.shape_cast %8 : vector<32xf32> to vector<32x1xf32>
    %cst_7 = arith.constant 6.400000e+01 : f32
    %10 = vector.broadcast %cst_7 : f32 to vector<32x1xf32>
    %11 = arith.divf %9, %10 : vector<32x1xf32>
    %12 = vector.broadcast %11 : vector<32x1xf32> to vector<32x64xf32>
    %13 = arith.subf %1, %12 : vector<32x64xf32>
    %14 = arith.mulf %13, %13 : vector<32x64xf32>
    %cst_8 = arith.constant dense<0.000000e+00> : vector<32xf32>
    %15 = vector.multi_reduction <add>, %14, %cst_8 [1] : vector<32x64xf32> to vector<32xf32>
    %16 = vector.shape_cast %15 : vector<32xf32> to vector<32x1xf32>
    %cst_9 = arith.constant 6.400000e+01 : f32
    %17 = vector.broadcast %cst_9 : f32 to vector<32x1xf32>
    %18 = arith.divf %16, %17 : vector<32x1xf32>
    %19 = vector.broadcast %11 : vector<32x1xf32> to vector<32x64xf32>
    %20 = arith.subf %1, %19 : vector<32x64xf32>
    %cst_10 = arith.constant 9.99999974E-6 : f32
    %21 = vector.broadcast %cst_10 : f32 to vector<32x1xf32>
    %22 = arith.addf %18, %21 : vector<32x1xf32>
    %23 = math.rsqrt %22 : vector<32x1xf32>
    %24 = vector.broadcast %23 : vector<32x1xf32> to vector<32x64xf32>
    %25 = arith.mulf %20, %24 : vector<32x64xf32>
    %26 = vector.broadcast %4 : vector<1x64xf32> to vector<32x64xf32>
    %27 = arith.mulf %25, %26 : vector<32x64xf32>
    %28 = vector.broadcast %7 : vector<1x64xf32> to vector<32x64xf32>
    %29 = arith.addf %27, %28 : vector<32x64xf32>
    %c0_11 = arith.constant 0 : index
    %c0_12 = arith.constant 0 : index
    %30 = vector.load %arg3[%c0_11, %c0_12] : memref<64x32xf32, #tpu.memory_space<vmem>>, vector<64x32xf32>
    %cst_13 = arith.constant dense<0.000000e+00> : vector<32x32xf32>
    %31 = tpu.matmul %29, %30, %cst_13 {dimension_numbers = #tpu.dot_dimension_numbers<[1], [0], [0], [1], [0, 0, 1, 1], [], []>} : vector<32x64xf32>, vector<64x32xf32>, vector<32x32xf32> -> vector<32x32xf32>
    %c2 = arith.constant 2 : index
    %c0_14 = arith.constant 0 : index
    %c0_15 = arith.constant 0 : index
    %32 = vector.load %arg2[%c2, %c0_14, %c0_15] : memref<10x1x128xf32, #tpu.memory_space<vmem>>, vector<1x1x128xf32>
    %33 = vector.shape_cast %32 : vector<1x1x128xf32> to vector<1x128xf32>
    %34 = vector.extract_strided_slice %33 {offsets = [0, 0], sizes = [1, 32], strides = [1, 1]} : vector<1x128xf32> to vector<1x32xf32>
    %35 = vector.broadcast %34 : vector<1x32xf32> to vector<32x32xf32>
    %36 = arith.addf %31, %35 : vector<32x32xf32>
    %c3 = arith.constant 3 : index
    %c0_16 = arith.constant 0 : index
    %c0_17 = arith.constant 0 : index
    %37 = vector.load %arg2[%c3, %c0_16, %c0_17] : memref<10x1x128xf32, #tpu.memory_space<vmem>>, vector<1x1x128xf32>
    %38 = vector.shape_cast %37 : vector<1x1x128xf32> to vector<1x128xf32>
    %39 = vector.extract_strided_slice %38 {offsets = [0, 0], sizes = [1, 32], strides = [1, 1]} : vector<1x128xf32> to vector<1x32xf32>
    %c4 = arith.constant 4 : index
    %c0_18 = arith.constant 0 : index
    %c0_19 = arith.constant 0 : index
    %40 = vector.load %arg2[%c4, %c0_18, %c0_19] : memref<10x1x128xf32, #tpu.memory_space<vmem>>, vector<1x1x128xf32>
    %41 = vector.shape_cast %40 : vector<1x1x128xf32> to vector<1x128xf32>
    %42 = vector.extract_strided_slice %41 {offsets = [0, 0], sizes = [1, 32], strides = [1, 1]} : vector<1x128xf32> to vector<1x32xf32>
    %cst_20 = arith.constant dense<0.000000e+00> : vector<32xf32>
    %43 = vector.multi_reduction <add>, %36, %cst_20 [1] : vector<32x32xf32> to vector<32xf32>
    %44 = vector.shape_cast %43 : vector<32xf32> to vector<32x1xf32>
    %cst_21 = arith.constant 3.200000e+01 : f32
    %45 = vector.broadcast %cst_21 : f32 to vector<32x1xf32>
    %46 = arith.divf %44, %45 : vector<32x1xf32>
    %47 = vector.broadcast %46 : vector<32x1xf32> to vector<32x32xf32>
    %48 = arith.subf %36, %47 : vector<32x32xf32>
    %49 = arith.mulf %48, %48 : vector<32x32xf32>
    %cst_22 = arith.constant dense<0.000000e+00> : vector<32xf32>
    %50 = vector.multi_reduction <add>, %49, %cst_22 [1] : vector<32x32xf32> to vector<32xf32>
    %51 = vector.shape_cast %50 : vector<32xf32> to vector<32x1xf32>
    %cst_23 = arith.constant 3.200000e+01 : f32
    %52 = vector.broadcast %cst_23 : f32 to vector<32x1xf32>
    %53 = arith.divf %51, %52 : vector<32x1xf32>
    %54 = vector.broadcast %46 : vector<32x1xf32> to vector<32x32xf32>
    %55 = arith.subf %36, %54 : vector<32x32xf32>
    %cst_24 = arith.constant 9.99999974E-6 : f32
    %56 = vector.broadcast %cst_24 : f32 to vector<32x1xf32>
    %57 = arith.addf %53, %56 : vector<32x1xf32>
    %58 = math.rsqrt %57 : vector<32x1xf32>
    %59 = vector.broadcast %58 : vector<32x1xf32> to vector<32x32xf32>
    %60 = arith.mulf %55, %59 : vector<32x32xf32>
    %61 = vector.broadcast %39 : vector<1x32xf32> to vector<32x32xf32>
    %62 = arith.mulf %60, %61 : vector<32x32xf32>
    %63 = vector.broadcast %42 : vector<1x32xf32> to vector<32x32xf32>
    %64 = arith.addf %62, %63 : vector<32x32xf32>
    %c0_25 = arith.constant 0 : index
    %c0_26 = arith.constant 0 : index
    %65 = vector.load %arg4[%c0_25, %c0_26] : memref<32x128xf32, #tpu.memory_space<vmem>>, vector<32x128xf32>
    %cst_27 = arith.constant dense<0.000000e+00> : vector<32x128xf32>
    %66 = tpu.matmul %64, %65, %cst_27 {dimension_numbers = #tpu.dot_dimension_numbers<[1], [0], [0], [1], [0, 0, 1, 1], [], []>} : vector<32x32xf32>, vector<32x128xf32>, vector<32x128xf32> -> vector<32x128xf32>
    %c5 = arith.constant 5 : index
    %c0_28 = arith.constant 0 : index
    %c0_29 = arith.constant 0 : index
    %67 = vector.load %arg2[%c5, %c0_28, %c0_29] : memref<10x1x128xf32, #tpu.memory_space<vmem>>, vector<1x1x128xf32>
    %68 = vector.shape_cast %67 : vector<1x1x128xf32> to vector<1x128xf32>
    %69 = vector.broadcast %68 : vector<1x128xf32> to vector<32x128xf32>
    %70 = arith.addf %66, %69 : vector<32x128xf32>
    %cst_30 = arith.constant 0.000000e+00 : f32
    %71 = vector.broadcast %cst_30 : f32 to vector<32x128xf32>
    %72 = arith.maximumf %70, %71 : vector<32x128xf32>
    %c0_31 = arith.constant 0 : index
    %c0_32 = arith.constant 0 : index
    %73 = vector.load %arg5[%c0_31, %c0_32] : memref<128x32xf32, #tpu.memory_space<vmem>>, vector<128x32xf32>
    %cst_33 = arith.constant dense<0.000000e+00> : vector<32x32xf32>
    %74 = tpu.matmul %72, %73, %cst_33 {dimension_numbers = #tpu.dot_dimension_numbers<[1], [0], [0], [1], [0, 0, 1, 1], [], []>} : vector<32x128xf32>, vector<128x32xf32>, vector<32x32xf32> -> vector<32x32xf32>
    %c6 = arith.constant 6 : index
    %c0_34 = arith.constant 0 : index
    %c0_35 = arith.constant 0 : index
    %75 = vector.load %arg2[%c6, %c0_34, %c0_35] : memref<10x1x128xf32, #tpu.memory_space<vmem>>, vector<1x1x128xf32>
    %76 = vector.shape_cast %75 : vector<1x1x128xf32> to vector<1x128xf32>
    %77 = vector.extract_strided_slice %76 {offsets = [0, 0], sizes = [1, 32], strides = [1, 1]} : vector<1x128xf32> to vector<1x32xf32>
    %78 = vector.broadcast %77 : vector<1x32xf32> to vector<32x32xf32>
    %79 = arith.addf %74, %78 : vector<32x32xf32>
    %80 = vector.shape_cast %79 : vector<32x32xf32> to vector<2x16x32xf32>
    "tpu.trace_start"() <{level = 10 : i32, message = "bpd,bqd->bpq"}> : () -> ()
    %cst_36 = arith.constant dense<0.000000e+00> : vector<2x16x16xf32>
    %81 = tpu.matmul %80, %80, %cst_36 {dimension_numbers = #tpu.dot_dimension_numbers<[2], [2], [1], [1], [0, 0, 0, 1, 1, 1], [0], [0]>} : vector<2x16x32xf32>, vector<2x16x32xf32>, vector<2x16x16xf32> -> vector<2x16x16xf32>
    "tpu.trace_stop"() : () -> ()
    %cst_37 = arith.constant dense<0xFF800000> : vector<2x16xf32>
    %82 = vector.multi_reduction <maximumf>, %81, %cst_37 [2] : vector<2x16x16xf32> to vector<2x16xf32>
    %83 = vector.shape_cast %82 : vector<2x16xf32> to vector<2x16x1xf32>
    %84 = vector.broadcast %83 : vector<2x16x1xf32> to vector<2x16x16xf32>
    %85 = arith.subf %81, %84 : vector<2x16x16xf32>
    %86 = math.exp %85 : vector<2x16x16xf32>
    %cst_38 = arith.constant dense<0.000000e+00> : vector<2x16xf32>
    %87 = vector.multi_reduction <add>, %86, %cst_38 [2] : vector<2x16x16xf32> to vector<2x16xf32>
    %88 = vector.shape_cast %87 : vector<2x16xf32> to vector<2x16x1xf32>
    %89 = tpu.reciprocal %88 : vector<2x16x1xf32> -> vector<2x16x1xf32>
    %90 = vector.broadcast %89 : vector<2x16x1xf32> to vector<2x16x16xf32>
    %91 = arith.mulf %86, %90 : vector<2x16x16xf32>
    %cst_39 = arith.constant 0.000000e+00 : f32
    %92 = vector.broadcast %cst_39 : f32 to vector<2x32xf32>
    %93 = vector.extract_strided_slice %91 {offsets = [0, 0, 0], sizes = [2, 1, 16], strides = [1, 1, 1]} : vector<2x16x16xf32> to vector<2x1x16xf32>
    %94 = vector.shape_cast %93 : vector<2x1x16xf32> to vector<2x16xf32>
    %c0_40 = arith.constant 0 : index
    %c0_41 = arith.constant 0 : index
    %c0_42 = arith.constant 0 : index
    %95 = vector.load %arg6[%c0_40, %c0_41, %c0_42] : memref<16x16x32xf32, #tpu.memory_space<vmem>>, vector<1x16x32xf32>
    %96 = vector.shape_cast %95 : vector<1x16x32xf32> to vector<16x32xf32>
    %cst_43 = arith.constant dense<0.000000e+00> : vector<2x32xf32>
    %97 = tpu.matmul %94, %96, %cst_43 {dimension_numbers = #tpu.dot_dimension_numbers<[1], [0], [0], [1], [0, 0, 1, 1], [], []>} : vector<2x16xf32>, vector<16x32xf32>, vector<2x32xf32> -> vector<2x32xf32>
    %98 = arith.addf %92, %97 : vector<2x32xf32>
    %99 = vector.extract_strided_slice %91 {offsets = [0, 1, 0], sizes = [2, 1, 16], strides = [1, 1, 1]} : vector<2x16x16xf32> to vector<2x1x16xf32>
    %100 = vector.shape_cast %99 : vector<2x1x16xf32> to vector<2x16xf32>
    %c1_44 = arith.constant 1 : index
    %c0_45 = arith.constant 0 : index
    %c0_46 = arith.constant 0 : index
    %101 = vector.load %arg6[%c1_44, %c0_45, %c0_46] : memref<16x16x32xf32, #tpu.memory_space<vmem>>, vector<1x16x32xf32>
    %102 = vector.shape_cast %101 : vector<1x16x32xf32> to vector<16x32xf32>
    %cst_47 = arith.constant dense<0.000000e+00> : vector<2x32xf32>
    %103 = tpu.matmul %100, %102, %cst_47 {dimension_numbers = #tpu.dot_dimension_numbers<[1], [0], [0], [1], [0, 0, 1, 1], [], []>} : vector<2x16xf32>, vector<16x32xf32>, vector<2x32xf32> -> vector<2x32xf32>
    %104 = arith.addf %98, %103 : vector<2x32xf32>
    %105 = vector.extract_strided_slice %91 {offsets = [0, 2, 0], sizes = [2, 1, 16], strides = [1, 1, 1]} : vector<2x16x16xf32> to vector<2x1x16xf32>
    %106 = vector.shape_cast %105 : vector<2x1x16xf32> to vector<2x16xf32>
    %c2_48 = arith.constant 2 : index
    %c0_49 = arith.constant 0 : index
    %c0_50 = arith.constant 0 : index
    %107 = vector.load %arg6[%c2_48, %c0_49, %c0_50] : memref<16x16x32xf32, #tpu.memory_space<vmem>>, vector<1x16x32xf32>
    %108 = vector.shape_cast %107 : vector<1x16x32xf32> to vector<16x32xf32>
    %cst_51 = arith.constant dense<0.000000e+00> : vector<2x32xf32>
    %109 = tpu.matmul %106, %108, %cst_51 {dimension_numbers = #tpu.dot_dimension_numbers<[1], [0], [0], [1], [0, 0, 1, 1], [], []>} : vector<2x16xf32>, vector<16x32xf32>, vector<2x32xf32> -> vector<2x32xf32>
    %110 = arith.addf %104, %109 : vector<2x32xf32>
    %111 = vector.extract_strided_slice %91 {offsets = [0, 3, 0], sizes = [2, 1, 16], strides = [1, 1, 1]} : vector<2x16x16xf32> to vector<2x1x16xf32>
    %112 = vector.shape_cast %111 : vector<2x1x16xf32> to vector<2x16xf32>
    %c3_52 = arith.constant 3 : index
    %c0_53 = arith.constant 0 : index
    %c0_54 = arith.constant 0 : index
    %113 = vector.load %arg6[%c3_52, %c0_53, %c0_54] : memref<16x16x32xf32, #tpu.memory_space<vmem>>, vector<1x16x32xf32>
    %114 = vector.shape_cast %113 : vector<1x16x32xf32> to vector<16x32xf32>
    %cst_55 = arith.constant dense<0.000000e+00> : vector<2x32xf32>
    %115 = tpu.matmul %112, %114, %cst_55 {dimension_numbers = #tpu.dot_dimension_numbers<[1], [0], [0], [1], [0, 0, 1, 1], [], []>} : vector<2x16xf32>, vector<16x32xf32>, vector<2x32xf32> -> vector<2x32xf32>
    %116 = arith.addf %110, %115 : vector<2x32xf32>
    %117 = vector.extract_strided_slice %91 {offsets = [0, 4, 0], sizes = [2, 1, 16], strides = [1, 1, 1]} : vector<2x16x16xf32> to vector<2x1x16xf32>
    %118 = vector.shape_cast %117 : vector<2x1x16xf32> to vector<2x16xf32>
    %c4_56 = arith.constant 4 : index
    %c0_57 = arith.constant 0 : index
    %c0_58 = arith.constant 0 : index
    %119 = vector.load %arg6[%c4_56, %c0_57, %c0_58] : memref<16x16x32xf32, #tpu.memory_space<vmem>>, vector<1x16x32xf32>
    %120 = vector.shape_cast %119 : vector<1x16x32xf32> to vector<16x32xf32>
    %cst_59 = arith.constant dense<0.000000e+00> : vector<2x32xf32>
    %121 = tpu.matmul %118, %120, %cst_59 {dimension_numbers = #tpu.dot_dimension_numbers<[1], [0], [0], [1], [0, 0, 1, 1], [], []>} : vector<2x16xf32>, vector<16x32xf32>, vector<2x32xf32> -> vector<2x32xf32>
    %122 = arith.addf %116, %121 : vector<2x32xf32>
    %123 = vector.extract_strided_slice %91 {offsets = [0, 5, 0], sizes = [2, 1, 16], strides = [1, 1, 1]} : vector<2x16x16xf32> to vector<2x1x16xf32>
    %124 = vector.shape_cast %123 : vector<2x1x16xf32> to vector<2x16xf32>
    %c5_60 = arith.constant 5 : index
    %c0_61 = arith.constant 0 : index
    %c0_62 = arith.constant 0 : index
    %125 = vector.load %arg6[%c5_60, %c0_61, %c0_62] : memref<16x16x32xf32, #tpu.memory_space<vmem>>, vector<1x16x32xf32>
    %126 = vector.shape_cast %125 : vector<1x16x32xf32> to vector<16x32xf32>
    %cst_63 = arith.constant dense<0.000000e+00> : vector<2x32xf32>
    %127 = tpu.matmul %124, %126, %cst_63 {dimension_numbers = #tpu.dot_dimension_numbers<[1], [0], [0], [1], [0, 0, 1, 1], [], []>} : vector<2x16xf32>, vector<16x32xf32>, vector<2x32xf32> -> vector<2x32xf32>
    %128 = arith.addf %122, %127 : vector<2x32xf32>
    %129 = vector.extract_strided_slice %91 {offsets = [0, 6, 0], sizes = [2, 1, 16], strides = [1, 1, 1]} : vector<2x16x16xf32> to vector<2x1x16xf32>
    %130 = vector.shape_cast %129 : vector<2x1x16xf32> to vector<2x16xf32>
    %c6_64 = arith.constant 6 : index
    %c0_65 = arith.constant 0 : index
    %c0_66 = arith.constant 0 : index
    %131 = vector.load %arg6[%c6_64, %c0_65, %c0_66] : memref<16x16x32xf32, #tpu.memory_space<vmem>>, vector<1x16x32xf32>
    %132 = vector.shape_cast %131 : vector<1x16x32xf32> to vector<16x32xf32>
    %cst_67 = arith.constant dense<0.000000e+00> : vector<2x32xf32>
    %133 = tpu.matmul %130, %132, %cst_67 {dimension_numbers = #tpu.dot_dimension_numbers<[1], [0], [0], [1], [0, 0, 1, 1], [], []>} : vector<2x16xf32>, vector<16x32xf32>, vector<2x32xf32> -> vector<2x32xf32>
    %134 = arith.addf %128, %133 : vector<2x32xf32>
    %135 = vector.extract_strided_slice %91 {offsets = [0, 7, 0], sizes = [2, 1, 16], strides = [1, 1, 1]} : vector<2x16x16xf32> to vector<2x1x16xf32>
    %136 = vector.shape_cast %135 : vector<2x1x16xf32> to vector<2x16xf32>
    %c7 = arith.constant 7 : index
    %c0_68 = arith.constant 0 : index
    %c0_69 = arith.constant 0 : index
    %137 = vector.load %arg6[%c7, %c0_68, %c0_69] : memref<16x16x32xf32, #tpu.memory_space<vmem>>, vector<1x16x32xf32>
    %138 = vector.shape_cast %137 : vector<1x16x32xf32> to vector<16x32xf32>
    %cst_70 = arith.constant dense<0.000000e+00> : vector<2x32xf32>
    %139 = tpu.matmul %136, %138, %cst_70 {dimension_numbers = #tpu.dot_dimension_numbers<[1], [0], [0], [1], [0, 0, 1, 1], [], []>} : vector<2x16xf32>, vector<16x32xf32>, vector<2x32xf32> -> vector<2x32xf32>
    %140 = arith.addf %134, %139 : vector<2x32xf32>
    %141 = vector.extract_strided_slice %91 {offsets = [0, 8, 0], sizes = [2, 1, 16], strides = [1, 1, 1]} : vector<2x16x16xf32> to vector<2x1x16xf32>
    %142 = vector.shape_cast %141 : vector<2x1x16xf32> to vector<2x16xf32>
    %c8 = arith.constant 8 : index
    %c0_71 = arith.constant 0 : index
    %c0_72 = arith.constant 0 : index
    %143 = vector.load %arg6[%c8, %c0_71, %c0_72] : memref<16x16x32xf32, #tpu.memory_space<vmem>>, vector<1x16x32xf32>
    %144 = vector.shape_cast %143 : vector<1x16x32xf32> to vector<16x32xf32>
    %cst_73 = arith.constant dense<0.000000e+00> : vector<2x32xf32>
    %145 = tpu.matmul %142, %144, %cst_73 {dimension_numbers = #tpu.dot_dimension_numbers<[1], [0], [0], [1], [0, 0, 1, 1], [], []>} : vector<2x16xf32>, vector<16x32xf32>, vector<2x32xf32> -> vector<2x32xf32>
    %146 = arith.addf %140, %145 : vector<2x32xf32>
    %147 = vector.extract_strided_slice %91 {offsets = [0, 9, 0], sizes = [2, 1, 16], strides = [1, 1, 1]} : vector<2x16x16xf32> to vector<2x1x16xf32>
    %148 = vector.shape_cast %147 : vector<2x1x16xf32> to vector<2x16xf32>
    %c9 = arith.constant 9 : index
    %c0_74 = arith.constant 0 : index
    %c0_75 = arith.constant 0 : index
    %149 = vector.load %arg6[%c9, %c0_74, %c0_75] : memref<16x16x32xf32, #tpu.memory_space<vmem>>, vector<1x16x32xf32>
    %150 = vector.shape_cast %149 : vector<1x16x32xf32> to vector<16x32xf32>
    %cst_76 = arith.constant dense<0.000000e+00> : vector<2x32xf32>
    %151 = tpu.matmul %148, %150, %cst_76 {dimension_numbers = #tpu.dot_dimension_numbers<[1], [0], [0], [1], [0, 0, 1, 1], [], []>} : vector<2x16xf32>, vector<16x32xf32>, vector<2x32xf32> -> vector<2x32xf32>
    %152 = arith.addf %146, %151 : vector<2x32xf32>
    %153 = vector.extract_strided_slice %91 {offsets = [0, 10, 0], sizes = [2, 1, 16], strides = [1, 1, 1]} : vector<2x16x16xf32> to vector<2x1x16xf32>
    %154 = vector.shape_cast %153 : vector<2x1x16xf32> to vector<2x16xf32>
    %c10 = arith.constant 10 : index
    %c0_77 = arith.constant 0 : index
    %c0_78 = arith.constant 0 : index
    %155 = vector.load %arg6[%c10, %c0_77, %c0_78] : memref<16x16x32xf32, #tpu.memory_space<vmem>>, vector<1x16x32xf32>
    %156 = vector.shape_cast %155 : vector<1x16x32xf32> to vector<16x32xf32>
    %cst_79 = arith.constant dense<0.000000e+00> : vector<2x32xf32>
    %157 = tpu.matmul %154, %156, %cst_79 {dimension_numbers = #tpu.dot_dimension_numbers<[1], [0], [0], [1], [0, 0, 1, 1], [], []>} : vector<2x16xf32>, vector<16x32xf32>, vector<2x32xf32> -> vector<2x32xf32>
    %158 = arith.addf %152, %157 : vector<2x32xf32>
    %159 = vector.extract_strided_slice %91 {offsets = [0, 11, 0], sizes = [2, 1, 16], strides = [1, 1, 1]} : vector<2x16x16xf32> to vector<2x1x16xf32>
    %160 = vector.shape_cast %159 : vector<2x1x16xf32> to vector<2x16xf32>
    %c11 = arith.constant 11 : index
    %c0_80 = arith.constant 0 : index
    %c0_81 = arith.constant 0 : index
    %161 = vector.load %arg6[%c11, %c0_80, %c0_81] : memref<16x16x32xf32, #tpu.memory_space<vmem>>, vector<1x16x32xf32>
    %162 = vector.shape_cast %161 : vector<1x16x32xf32> to vector<16x32xf32>
    %cst_82 = arith.constant dense<0.000000e+00> : vector<2x32xf32>
    %163 = tpu.matmul %160, %162, %cst_82 {dimension_numbers = #tpu.dot_dimension_numbers<[1], [0], [0], [1], [0, 0, 1, 1], [], []>} : vector<2x16xf32>, vector<16x32xf32>, vector<2x32xf32> -> vector<2x32xf32>
    %164 = arith.addf %158, %163 : vector<2x32xf32>
    %165 = vector.extract_strided_slice %91 {offsets = [0, 12, 0], sizes = [2, 1, 16], strides = [1, 1, 1]} : vector<2x16x16xf32> to vector<2x1x16xf32>
    %166 = vector.shape_cast %165 : vector<2x1x16xf32> to vector<2x16xf32>
    %c12 = arith.constant 12 : index
    %c0_83 = arith.constant 0 : index
    %c0_84 = arith.constant 0 : index
    %167 = vector.load %arg6[%c12, %c0_83, %c0_84] : memref<16x16x32xf32, #tpu.memory_space<vmem>>, vector<1x16x32xf32>
    %168 = vector.shape_cast %167 : vector<1x16x32xf32> to vector<16x32xf32>
    %cst_85 = arith.constant dense<0.000000e+00> : vector<2x32xf32>
    %169 = tpu.matmul %166, %168, %cst_85 {dimension_numbers = #tpu.dot_dimension_numbers<[1], [0], [0], [1], [0, 0, 1, 1], [], []>} : vector<2x16xf32>, vector<16x32xf32>, vector<2x32xf32> -> vector<2x32xf32>
    %170 = arith.addf %164, %169 : vector<2x32xf32>
    %171 = vector.extract_strided_slice %91 {offsets = [0, 13, 0], sizes = [2, 1, 16], strides = [1, 1, 1]} : vector<2x16x16xf32> to vector<2x1x16xf32>
    %172 = vector.shape_cast %171 : vector<2x1x16xf32> to vector<2x16xf32>
    %c13 = arith.constant 13 : index
    %c0_86 = arith.constant 0 : index
    %c0_87 = arith.constant 0 : index
    %173 = vector.load %arg6[%c13, %c0_86, %c0_87] : memref<16x16x32xf32, #tpu.memory_space<vmem>>, vector<1x16x32xf32>
    %174 = vector.shape_cast %173 : vector<1x16x32xf32> to vector<16x32xf32>
    %cst_88 = arith.constant dense<0.000000e+00> : vector<2x32xf32>
    %175 = tpu.matmul %172, %174, %cst_88 {dimension_numbers = #tpu.dot_dimension_numbers<[1], [0], [0], [1], [0, 0, 1, 1], [], []>} : vector<2x16xf32>, vector<16x32xf32>, vector<2x32xf32> -> vector<2x32xf32>
    %176 = arith.addf %170, %175 : vector<2x32xf32>
    %177 = vector.extract_strided_slice %91 {offsets = [0, 14, 0], sizes = [2, 1, 16], strides = [1, 1, 1]} : vector<2x16x16xf32> to vector<2x1x16xf32>
    %178 = vector.shape_cast %177 : vector<2x1x16xf32> to vector<2x16xf32>
    %c14 = arith.constant 14 : index
    %c0_89 = arith.constant 0 : index
    %c0_90 = arith.constant 0 : index
    %179 = vector.load %arg6[%c14, %c0_89, %c0_90] : memref<16x16x32xf32, #tpu.memory_space<vmem>>, vector<1x16x32xf32>
    %180 = vector.shape_cast %179 : vector<1x16x32xf32> to vector<16x32xf32>
    %cst_91 = arith.constant dense<0.000000e+00> : vector<2x32xf32>
    %181 = tpu.matmul %178, %180, %cst_91 {dimension_numbers = #tpu.dot_dimension_numbers<[1], [0], [0], [1], [0, 0, 1, 1], [], []>} : vector<2x16xf32>, vector<16x32xf32>, vector<2x32xf32> -> vector<2x32xf32>
    %182 = arith.addf %176, %181 : vector<2x32xf32>
    %183 = vector.extract_strided_slice %91 {offsets = [0, 15, 0], sizes = [2, 1, 16], strides = [1, 1, 1]} : vector<2x16x16xf32> to vector<2x1x16xf32>
    %184 = vector.shape_cast %183 : vector<2x1x16xf32> to vector<2x16xf32>
    %c15 = arith.constant 15 : index
    %c0_92 = arith.constant 0 : index
    %c0_93 = arith.constant 0 : index
    %185 = vector.load %arg6[%c15, %c0_92, %c0_93] : memref<16x16x32xf32, #tpu.memory_space<vmem>>, vector<1x16x32xf32>
    %186 = vector.shape_cast %185 : vector<1x16x32xf32> to vector<16x32xf32>
    %cst_94 = arith.constant dense<0.000000e+00> : vector<2x32xf32>
    %187 = tpu.matmul %184, %186, %cst_94 {dimension_numbers = #tpu.dot_dimension_numbers<[1], [0], [0], [1], [0, 0, 1, 1], [], []>} : vector<2x16xf32>, vector<16x32xf32>, vector<2x32xf32> -> vector<2x32xf32>
    %188 = arith.addf %182, %187 : vector<2x32xf32>
    %c7_95 = arith.constant 7 : index
    %c0_96 = arith.constant 0 : index
    %c0_97 = arith.constant 0 : index
    %189 = vector.load %arg2[%c7_95, %c0_96, %c0_97] : memref<10x1x128xf32, #tpu.memory_space<vmem>>, vector<1x1x128xf32>
    %190 = vector.shape_cast %189 : vector<1x1x128xf32> to vector<1x128xf32>
    %191 = vector.extract_strided_slice %190 {offsets = [0, 0], sizes = [1, 32], strides = [1, 1]} : vector<1x128xf32> to vector<1x32xf32>
    %192 = vector.broadcast %191 : vector<1x32xf32> to vector<2x32xf32>
    %193 = arith.addf %188, %192 : vector<2x32xf32>
    %cst_98 = arith.constant 0.000000e+00 : f32
    %194 = vector.broadcast %cst_98 : f32 to vector<2x32xf32>
    %195 = arith.maximumf %193, %194 : vector<2x32xf32>
    %c0_99 = arith.constant 0 : index
    %c0_100 = arith.constant 0 : index
    %196 = vector.load %arg7[%c0_99, %c0_100] : memref<32x32xf32, #tpu.memory_space<vmem>>, vector<32x32xf32>
    %cst_101 = arith.constant dense<0.000000e+00> : vector<2x32xf32>
    %197 = tpu.matmul %195, %196, %cst_101 {dimension_numbers = #tpu.dot_dimension_numbers<[1], [0], [0], [1], [0, 0, 1, 1], [], []>} : vector<2x32xf32>, vector<32x32xf32>, vector<2x32xf32> -> vector<2x32xf32>
    %c8_102 = arith.constant 8 : index
    %c0_103 = arith.constant 0 : index
    %c0_104 = arith.constant 0 : index
    %198 = vector.load %arg2[%c8_102, %c0_103, %c0_104] : memref<10x1x128xf32, #tpu.memory_space<vmem>>, vector<1x1x128xf32>
    %199 = vector.shape_cast %198 : vector<1x1x128xf32> to vector<1x128xf32>
    %200 = vector.extract_strided_slice %199 {offsets = [0, 0], sizes = [1, 32], strides = [1, 1]} : vector<1x128xf32> to vector<1x32xf32>
    %201 = vector.broadcast %200 : vector<1x32xf32> to vector<2x32xf32>
    %202 = arith.addf %197, %201 : vector<2x32xf32>
    %c0_105 = arith.constant 0 : index
    %c0_106 = arith.constant 0 : index
    %203 = vector.load %arg8[%c0_105, %c0_106] : memref<32x4xf32, #tpu.memory_space<vmem>>, vector<32x4xf32>
    %cst_107 = arith.constant dense<0.000000e+00> : vector<2x4xf32>
    %204 = tpu.matmul %202, %203, %cst_107 {dimension_numbers = #tpu.dot_dimension_numbers<[1], [0], [0], [1], [0, 0, 1, 1], [], []>} : vector<2x32xf32>, vector<32x4xf32>, vector<2x4xf32> -> vector<2x4xf32>
    %c9_108 = arith.constant 9 : index
    %c0_109 = arith.constant 0 : index
    %c0_110 = arith.constant 0 : index
    %205 = vector.load %arg2[%c9_108, %c0_109, %c0_110] : memref<10x1x128xf32, #tpu.memory_space<vmem>>, vector<1x1x128xf32>
    %206 = vector.shape_cast %205 : vector<1x1x128xf32> to vector<1x128xf32>
    %207 = vector.extract_strided_slice %206 {offsets = [0, 0], sizes = [1, 4], strides = [1, 1]} : vector<1x128xf32> to vector<1x4xf32>
    %208 = vector.broadcast %207 : vector<1x4xf32> to vector<2x4xf32>
    %209 = arith.addf %204, %208 : vector<2x4xf32>
    %c0_111 = arith.constant 0 : index
    %c0_112 = arith.constant 0 : index
    %c0_113 = arith.constant 0 : index
    %210 = vector.load %arg9[%c0_111, %c0_112, %c0_113] : memref<1x2x4xf32, #tpu.memory_space<vmem>>, vector<1x2x4xf32>
    %211 = vector.shape_cast %210 : vector<1x2x4xf32> to vector<2x4xf32>
    %212 = vector.shape_cast %209 : vector<2x4xf32> to vector<1x2x4xf32>
    tpu.vector_store %arg9[%c0_111, %c0_112, %c0_113], %212 {strides = array<i32>} : memref<1x2x4xf32, #tpu.memory_space<vmem>>, vector<1x2x4xf32>,
    return
  }
  func.func @transform_0(%arg0: i32) -> (i32, i32, i32) {
    %c0_i32 = arith.constant 0 : i32
    %c0_i32_0 = arith.constant 0 : i32
    %c0_i32_1 = arith.constant 0 : i32
    return %arg0, %c0_i32, %c0_i32_0 : i32, i32, i32
  }
  func.func @transform_1(%arg0: i32) -> (i32, i32, i32) {
    %c0_i32 = arith.constant 0 : i32
    %c0_i32_0 = arith.constant 0 : i32
    %c0_i32_1 = arith.constant 0 : i32
    %c0_i32_2 = arith.constant 0 : i32
    return %c0_i32, %c0_i32_0, %c0_i32_1 : i32, i32, i32
  }
  func.func @transform_2(%arg0: i32) -> (i32, i32) {
    %c0_i32 = arith.constant 0 : i32
    %c0_i32_0 = arith.constant 0 : i32
    %c0_i32_1 = arith.constant 0 : i32
    return %c0_i32, %c0_i32_0 : i32, i32
  }
  func.func @transform_3(%arg0: i32) -> (i32, i32) {
    %c0_i32 = arith.constant 0 : i32
    %c0_i32_0 = arith.constant 0 : i32
    %c0_i32_1 = arith.constant 0 : i32
    return %c0_i32, %c0_i32_0 : i32, i32
  }
  func.func @transform_4(%arg0: i32) -> (i32, i32) {
    %c0_i32 = arith.constant 0 : i32
    %c0_i32_0 = arith.constant 0 : i32
    %c0_i32_1 = arith.constant 0 : i32
    return %c0_i32, %c0_i32_0 : i32, i32
  }
  func.func @transform_5(%arg0: i32) -> (i32, i32, i32) {
    %c0_i32 = arith.constant 0 : i32
    %c0_i32_0 = arith.constant 0 : i32
    %c0_i32_1 = arith.constant 0 : i32
    %c0_i32_2 = arith.constant 0 : i32
    return %c0_i32, %c0_i32_0, %c0_i32_1 : i32, i32, i32
  }
  func.func @transform_6(%arg0: i32) -> (i32, i32) {
    %c0_i32 = arith.constant 0 : i32
    %c0_i32_0 = arith.constant 0 : i32
    %c0_i32_1 = arith.constant 0 : i32
    return %c0_i32, %c0_i32_0 : i32, i32
  }
  func.func @transform_7(%arg0: i32) -> (i32, i32) {
    %c0_i32 = arith.constant 0 : i32
    %c0_i32_0 = arith.constant 0 : i32
    %c0_i32_1 = arith.constant 0 : i32
    return %c0_i32, %c0_i32_0 : i32, i32
  }
  func.func @transform_8(%arg0: i32) -> (i32, i32, i32) {
    %c0_i32 = arith.constant 0 : i32
    %c0_i32_0 = arith.constant 0 : i32
    %c0_i32_1 = arith.constant 0 : i32
    return %arg0, %c0_i32, %c0_i32_0 : i32, i32, i32
  }
}

</mosaic_0001>

<llo_original>
// kernel: corelnet_softmax_forward.1
$region0: #{corelnet_softmax_forward.1}
  #allocation0 [shape = 'u32[]', space=smem, size = 0x4, offset = 0x4, fixed_abs, tag = 'smem constant byte address 0x4 - core index']
  #allocation1 [shape = 'u32[144,128]{1,0:T(1,128)}', space=vmem, size = 0x12000, scoped, tag = 'internal scratch']
  %s0 = inlined_call_operand.vmem [shape: f32[2,16,64], index: 0, kind: input, shape index: {}]
  %s1 = inlined_call_operand.vmem [shape: f32[10,1,128], index: 1, kind: input, shape index: {}]
  %s2 = inlined_call_operand.vmem [shape: f32[64,32], index: 2, kind: input, shape index: {}]
  %s3 = inlined_call_operand.vmem [shape: f32[32,128], index: 3, kind: input, shape index: {}]
  %s4 = inlined_call_operand.vmem [shape: f32[128,32], index: 4, kind: input, shape index: {}]
  %s5 = inlined_call_operand.vmem [shape: f32[16,16,32], index: 5, kind: input, shape index: {}]
  %s6 = inlined_call_operand.vmem [shape: f32[32,32], index: 6, kind: input, shape index: {}]
  %s7 = inlined_call_operand.vmem [shape: f32[32,4], index: 7, kind: input, shape index: {}]
  %s8 = inlined_call_operand.hbm [shape: f32[1,2,4], index: 8, kind: output, shape index: {}]
  %s9 = sld [smem:[#allocation0]]
  $region42: #{corelnet_softmax_forward.1} parent=0
    _
  %s11 = ssub.s32 1, %s9
  %s12 = scalar_select 0, %s11, %s9
  $region1: #{corelnet_softmax_forward.1} parent=0
    #allocation2 [shape = 'u8[1024]{0}', space=vmem, size = 0x400, scoped, tag = 'output window, operand 0, single buffered']
    #allocation3 [shape = 's32[1]{0}', space=sflag, size = 0x4, scoped, tag = 'scoped memory for corelnet_softmax_forward.1']
    %13 = vsyncpa [#allocation3], 0
    // Predicated region
    $region2: #{corelnet_softmax_forward.1} parent=1 // pred_check
      _
    $region3: #{corelnet_softmax_forward.1} parent=1 // pred_check_branch
      %15 = sbr.rel (0) target = $region5
    $region4: #{corelnet_softmax_forward.1} parent=1 // pred_region
      _
    $region5: #{corelnet_softmax_forward.1} parent=1 // pred_fallthru
      _
    // Predicated region
    $region6: #{corelnet_softmax_forward.1} parent=1 // pred_check
      _
    $region7: #{corelnet_softmax_forward.1} parent=1 // pred_check_branch
      %17 = sbr.rel (0) target = $region9
    $region8: #{corelnet_softmax_forward.1} parent=1 // pred_region
      _
    $region9: #{corelnet_softmax_forward.1} parent=1 // pred_fallthru
      _
    // Predicated region
    $region10: #{corelnet_softmax_forward.1} parent=1 // pred_check
      _
    $region11: #{corelnet_softmax_forward.1} parent=1 // pred_check_branch
      %19 = sbr.rel (0) target = $region13
    $region12: #{corelnet_softmax_forward.1} parent=1 // pred_region
      _
    $region13: #{corelnet_softmax_forward.1} parent=1 // pred_fallthru
      _
    // Predicated region
    $region14: #{corelnet_softmax_forward.1} parent=1 // pred_check
      _
    $region15: #{corelnet_softmax_forward.1} parent=1 // pred_check_branch
      %21 = sbr.rel (0) target = $region17
    $region16: #{corelnet_softmax_forward.1} parent=1 // pred_region
      _
    $region17: #{corelnet_softmax_forward.1} parent=1 // pred_fallthru
      _
    // Predicated region
    $region18: #{corelnet_softmax_forward.1} parent=1 // pred_check
      _
    $region19: #{corelnet_softmax_forward.1} parent=1 // pred_check_branch
      %23 = sbr.rel (0) target = $region21
    $region20: #{corelnet_softmax_forward.1} parent=1 // pred_region
      _
    $region21: #{corelnet_softmax_forward.1} parent=1 // pred_fallthru
      _
    // Predicated region
    $region22: #{corelnet_softmax_forward.1} parent=1 // pred_check
      _
    $region23: #{corelnet_softmax_forward.1} parent=1 // pred_check_branch
      %25 = sbr.rel (0) target = $region25
    $region24: #{corelnet_softmax_forward.1} parent=1 // pred_region
      _
    $region25: #{corelnet_softmax_forward.1} parent=1 // pred_fallthru
      _
    // Predicated region
    $region26: #{corelnet_softmax_forward.1} parent=1 // pred_check
      _
    $region27: #{corelnet_softmax_forward.1} parent=1 // pred_check_branch
      %27 = sbr.rel (0) target = $region29
    $region28: #{corelnet_softmax_forward.1} parent=1 // pred_region
      _
    $region29: #{corelnet_softmax_forward.1} parent=1 // pred_fallthru
      _
    // Predicated region
    $region30: #{corelnet_softmax_forward.1} parent=1 // pred_check
      _
    $region31: #{corelnet_softmax_forward.1} parent=1 // pred_check_branch
      %29 = sbr.rel (0) target = $region33
    $region32: #{corelnet_softmax_forward.1} parent=1 // pred_region
      _
    $region33: #{corelnet_softmax_forward.1} parent=1 // pred_fallthru
      _
    %v30 = vld [vmem:[%s0] sm:$0xff]
    %v31 = vld [vmem:[%s0 + $0x8] sm:$0xff]
    %v32 = vld [vmem:[%s0 + $0x10] sm:$0xff]
    %v33 = vld [vmem:[%s0 + $0x18] sm:$0xff]
    %v34 = vld [vmem:[%s1] sm:$0x1]
    %s35 = scalar_lea.vmem %s1, 1
    %v36 = vld [vmem:[%s35] sm:$0x1]
    %vm37 = vcmask 523264
    %v38 = vsel %vm37, %v30, 0.0
    %39 = vadd.xlane.f32.xlu0 %v38
    %v40 = vpop.xlane.xlu0 %39
    %v41 = vsel %vm37, %v31, 0.0
    %42 = vadd.xlane.f32.xlu0 %v41
    %v43 = vpop.xlane.xlu0 %42
    %v44 = vsel %vm37, %v32, 0.0
    %45 = vadd.xlane.f32.xlu0 %v44
    %v46 = vpop.xlane.xlu0 %45
    %v47 = vsel %vm37, %v33, 0.0
    %48 = vadd.xlane.f32.xlu0 %v47
    %v49 = vpop.xlane.xlu0 %48
    %v50 = vrcp.pop 64.0
    %v51 = vmul.f32 %v40, %v50
    %v52 = vmul.f32 %v43, %v50
    %v53 = vmul.f32 %v46, %v50
    %v54 = vmul.f32 %v49, %v50
    %v55 = vsub.f32 %v30, %v51
    %v56 = vsub.f32 %v31, %v52
    %v57 = vsub.f32 %v32, %v53
    %v58 = vsub.f32 %v33, %v54
    %v59 = vmul.f32 %v55, %v55
    %v60 = vmul.f32 %v56, %v56
    %v61 = vmul.f32 %v57, %v57
    %v62 = vmul.f32 %v58, %v58
    %v63 = vsel %vm37, %v59, 0.0
    %64 = vadd.xlane.f32.xlu0 %v63
    %v65 = vpop.xlane.xlu0 %64
    %v66 = vsel %vm37, %v60, 0.0
    %67 = vadd.xlane.f32.xlu0 %v66
    %v68 = vpop.xlane.xlu0 %67
    %v69 = vsel %vm37, %v61, 0.0
    %70 = vadd.xlane.f32.xlu0 %v69
    %v71 = vpop.xlane.xlu0 %70
    %v72 = vsel %vm37, %v62, 0.0
    %73 = vadd.xlane.f32.xlu0 %v72
    %v74 = vpop.xlane.xlu0 %73
    %v75 = vmul.f32 %v65, %v50
    %v76 = vmul.f32 %v68, %v50
    %v77 = vmul.f32 %v71, %v50
    %v78 = vmul.f32 %v74, %v50
    %v79 = vadd.f32 %v75, 1e-05
    %v80 = vadd.f32 %v76, 1e-05
    %v81 = vadd.f32 %v77, 1e-05
    %v82 = vadd.f32 %v78, 1e-05
    %v83 = vrsqrt.pop %v79
    %v84 = vrsqrt.pop %v80
    %v85 = vrsqrt.pop %v81
    %v86 = vrsqrt.pop %v82
    %v87 = vmul.f32 %v55, %v83
    %v88 = vmul.f32 %v56, %v84
    %v89 = vmul.f32 %v57, %v85
    %v90 = vmul.f32 %v58, %v86
    %v92 = vlaneseq
    %v93 = vshrl.u32 %v92, 7
    %v94 = vsub.s32 0, %v93
    %v95 = vrot.slane %v34, %v94
    %v97 = vmul.f32 %v87, %v95
    %v98 = vmul.f32 %v88, %v95
    %v99 = vmul.f32 %v89, %v95
    %v100 = vmul.f32 %v90, %v95
    %v102 = vlaneseq
    %v103 = vshrl.u32 %v102, 7
    %v104 = vsub.s32 0, %v103
    %v105 = vrot.slane %v36, %v104
    %v107 = vadd.f32 %v97, %v105
    %v108 = vadd.f32 %v98, %v105
    %v109 = vadd.f32 %v99, %v105
    %v110 = vadd.f32 %v100, %v105
    %v111 = vld [vmem:[%s2] sm:$0xff]
    %v112 = vld [vmem:[%s2 + $0x8] sm:$0xff]
    %v113 = vld [vmem:[%s2 + $0x10] sm:$0xff]
    %v114 = vld [vmem:[%s2 + $0x18] sm:$0xff]
    %v115 = vld [vmem:[%s2 + $0x20] sm:$0xff]
    %v116 = vld [vmem:[%s2 + $0x28] sm:$0xff]
    %v117 = vld [vmem:[%s2 + $0x30] sm:$0xff]
    %v118 = vld [vmem:[%s2 + $0x38] sm:$0xff]
    %s119 = scalar_lea.vmem %s1, 2
    %v120 = vld [vmem:[%s119] sm:$0x1]
    %v122 = vlaneseq
    %v123 = vshrl.u32 %v122, 7
    %v124 = vsub.s32 0, %v123
    %v125 = vrot.slane %v120, %v124
    %v128 = vsel %vm37, %v107, 0
    %v131 = vsel %vm37, %v108, 0
    %v134 = vsel %vm37, %v109, 0
    %v137 = vsel %vm37, %v110, 0
    %139 = vmatprep.subr.mxu0 0.0
    %140 = vmatpush1.msra.mxu0 0.0
    %141 = vmatprep.subr.mxu0 0.0
    %142 = vmatpush1.msra.mxu0 0.0
    %143 = vmatprep.subr.mxu0 0.0
    %144 = vmatpush1.msra.mxu0 0.0
    %145 = vmatprep.subr.mxu0 0.0
    %146 = vmatpush1.msra.mxu0 0.0
    %147 = vmatprep.subr.mxu0 0.0
    %148 = vmatpush1.msra.mxu0 0.0
    %149 = vmatprep.subr.mxu0 0.0
    %150 = vmatpush1.msra.mxu0 0.0
    %151 = vmatprep.subr.mxu0 0.0
    %152 = vmatpush1.msra.mxu0 0.0
    %153 = vmatprep.subr.mxu0 0.0
    %154 = vmatpush1.msra.mxu0 0.0
    %155 = vmatprep.subr.mxu0 0.0
    %156 = vmatpush1.msra.mxu0 %v118
    %157 = vmatprep.subr.mxu0 0.0
    %158 = vmatpush1.msra.mxu0 %v117
    %159 = vmatprep.subr.mxu0 0.0
    %160 = vmatpush1.msra.mxu0 %v116
    %161 = vmatprep.subr.mxu0 0.0
    %162 = vmatpush1.msra.mxu0 %v115
    %163 = vmatprep.subr.mxu0 0.0
    %164 = vmatpush1.msra.mxu0 %v114
    %165 = vmatprep.subr.mxu0 0.0
    %166 = vmatpush1.msra.mxu0 %v113
    %167 = vmatprep.subr.mxu0 0.0
    %168 = vmatpush1.msra.mxu0 %v112
    %169 = vmatprep.subr.mxu0 0.0
    %170 = vmatpush1.msra.mxu0 %v111
    %171 = vmatprep.subr.mxu0 0.0
    %172 = vmatpush2.msra.mxu0 0.0
    %173 = vmatprep.subr.mxu0 0.0
    %174 = vmatpush2.msra.mxu0 0.0
    %175 = vmatprep.subr.mxu0 0.0
    %176 = vmatpush2.msra.mxu0 0.0
    %177 = vmatprep.subr.mxu0 0.0
    %178 = vmatpush2.msra.mxu0 0.0
    %179 = vmatprep.subr.mxu0 0.0
    %180 = vmatpush2.msra.mxu0 0.0
    %181 = vmatprep.subr.mxu0 0.0
    %182 = vmatpush2.msra.mxu0 0.0
    %183 = vmatprep.subr.mxu0 0.0
    %184 = vmatpush2.msra.mxu0 0.0
    %185 = vmatprep.subr.mxu0 0.0
    %186 = vmatpush2.msra.mxu0 0.0
    %187 = vmatprep.subr.mxu0 0.0
    %188 = vmatpush2.msra.mxu0 0.0
    %189 = vmatprep.subr.mxu0 0.0
    %190 = vmatpush2.msra.mxu0 0.0
    %191 = vmatprep.subr.mxu0 0.0
    %192 = vmatpush2.msra.mxu0 0.0
    %193 = vmatprep.subr.mxu0 0.0
    %194 = vmatpush2.msra.mxu0 0.0
    %195 = vmatprep.subr.mxu0 0.0
    %196 = vmatpush2.msra.mxu0 0.0
    %197 = vmatprep.subr.mxu0 0.0
    %198 = vmatpush2.msra.mxu0 0.0
    %199 = vmatprep.subr.mxu0 0.0
    %200 = vmatpush2.msra.mxu0 0.0
    %201 = vmatprep.subr.mxu0 0.0
    %202 = vmatpush2.msra.mxu0 0.0
    %203 = vmatprep.mubr.f32.mxu0 0.0
    %204 = vmatmul.mubr.f32.gmra.mxu0 %v128
    %v205 = vpop.f32.mrf.mxu0
    %v206 = vadd.f32 %v125, %v205
    %v207 = vpop.f32.mrf.mxu0
    %208 = vmatprep.mubr.f32.mxu0 0.0
    %209 = vmatmul.mubr.f32.gmra.mxu0 %v131
    %v210 = vpop.f32.mrf.mxu0
    %v211 = vadd.f32 %v125, %v210
    %v212 = vpop.f32.mrf.mxu0
    %213 = vmatprep.mubr.f32.mxu0 0.0
    %214 = vmatmul.mubr.f32.gmra.mxu0 %v134
    %v215 = vpop.f32.mrf.mxu0
    %v216 = vadd.f32 %v125, %v215
    %v217 = vpop.f32.mrf.mxu0
    %218 = vmatprep.mubr.f32.mxu0 0.0
    %219 = vmatmul.mubr.f32.gmra.mxu0 %v137
    %v220 = vpop.f32.mrf.mxu0
    %v221 = vadd.f32 %v125, %v220
    %v222 = vpop.f32.mrf.mxu0
    %223 = vdwg.mxu0
    %s224 = scalar_lea.vmem %s1, 3
    %v225 = vld [vmem:[%s224] sm:$0x1]
    %s226 = scalar_lea.vmem %s1, 4
    %v227 = vld [vmem:[%s226] sm:$0x1]
    %vm228 = vcmask 261120
    %v229 = vsel %vm228, %v206, 0.0
    %230 = vadd.xlane.f32.xlu0 %v229
    %v231 = vpop.xlane.xlu0 %230
    %v232 = vsel %vm228, %v211, 0.0
    %233 = vadd.xlane.f32.xlu0 %v232
    %v234 = vpop.xlane.xlu0 %233
    %v235 = vsel %vm228, %v216, 0.0
    %236 = vadd.xlane.f32.xlu0 %v235
    %v237 = vpop.xlane.xlu0 %236
    %v238 = vsel %vm228, %v221, 0.0
    %239 = vadd.xlane.f32.xlu0 %v238
    %v240 = vpop.xlane.xlu0 %239
    %v241 = vrcp.pop 32.0
    %v242 = vmul.f32 %v231, %v241
    %v243 = vmul.f32 %v234, %v241
    %v244 = vmul.f32 %v237, %v241
    %v245 = vmul.f32 %v240, %v241
    %v246 = vsub.f32 %v206, %v242
    %v247 = vsub.f32 %v211, %v243
    %v248 = vsub.f32 %v216, %v244
    %v249 = vsub.f32 %v221, %v245
    %v250 = vmul.f32 %v246, %v246
    %v251 = vmul.f32 %v247, %v247
    %v252 = vmul.f32 %v248, %v248
    %v253 = vmul.f32 %v249, %v249
    %v254 = vsel %vm228, %v250, 0.0
    %255 = vadd.xlane.f32.xlu0 %v254
    %v256 = vpop.xlane.xlu0 %255
    %v257 = vsel %vm228, %v251, 0.0
    %258 = vadd.xlane.f32.xlu0 %v257
    %v259 = vpop.xlane.xlu0 %258
    %v260 = vsel %vm228, %v252, 0.0
    %261 = vadd.xlane.f32.xlu0 %v260
    %v262 = vpop.xlane.xlu0 %261
    %v263 = vsel %vm228, %v253, 0.0
    %264 = vadd.xlane.f32.xlu0 %v263
    %v265 = vpop.xlane.xlu0 %264
    %v266 = vmul.f32 %v256, %v241
    %v267 = vmul.f32 %v259, %v241
    %v268 = vmul.f32 %v262, %v241
    %v269 = vmul.f32 %v265, %v241
    %v270 = vadd.f32 %v266, 1e-05
    %v271 = vadd.f32 %v267, 1e-05
    %v272 = vadd.f32 %v268, 1e-05
    %v273 = vadd.f32 %v269, 1e-05
    %v274 = vrsqrt.pop %v270
    %v275 = vrsqrt.pop %v271
    %v276 = vrsqrt.pop %v272
    %v277 = vrsqrt.pop %v273
    %v278 = vmul.f32 %v246, %v274
    %v279 = vmul.f32 %v247, %v275
    %v280 = vmul.f32 %v248, %v276
    %v281 = vmul.f32 %v249, %v277
    %v283 = vlaneseq
    %v284 = vshrl.u32 %v283, 7
    %v285 = vsub.s32 0, %v284
    %v286 = vrot.slane %v225, %v285
    %v288 = vmul.f32 %v278, %v286
    %v289 = vmul.f32 %v279, %v286
    %v290 = vmul.f32 %v280, %v286
    %v291 = vmul.f32 %v281, %v286
    %v293 = vlaneseq
    %v294 = vshrl.u32 %v293, 7
    %v295 = vsub.s32 0, %v294
    %v296 = vrot.slane %v227, %v295
    %v298 = vadd.f32 %v288, %v296
    %v299 = vadd.f32 %v289, %v296
    %v300 = vadd.f32 %v290, %v296
    %v301 = vadd.f32 %v291, %v296
    %v302 = vld [vmem:[%s3] sm:$0xff]
    %v303 = vld [vmem:[%s3 + $0x8] sm:$0xff]
    %v304 = vld [vmem:[%s3 + $0x10] sm:$0xff]
    %v305 = vld [vmem:[%s3 + $0x18] sm:$0xff]
    %s306 = scalar_lea.vmem %s1, 5
    %v307 = vld [vmem:[%s306] sm:$0x1]
    %v309 = vlaneseq
    %v310 = vshrl.u32 %v309, 7
    %v311 = vsub.s32 0, %v310
    %v312 = vrot.slane %v307, %v311
    %v315 = vsel %vm228, %v298, 0
    %v318 = vsel %vm228, %v299, 0
    %v321 = vsel %vm228, %v300, 0
    %v324 = vsel %vm228, %v301, 0
    %326 = vmatprep.subr.mxu0 0.0
    %327 = vmatpush1.msra.mxu0 0.0
    %328 = vmatprep.subr.mxu0 0.0
    %329 = vmatpush1.msra.mxu0 0.0
    %330 = vmatprep.subr.mxu0 0.0
    %331 = vmatpush1.msra.mxu0 0.0
    %332 = vmatprep.subr.mxu0 0.0
    %333 = vmatpush1.msra.mxu0 0.0
    %334 = vmatprep.subr.mxu0 0.0
    %335 = vmatpush1.msra.mxu0 0.0
    %336 = vmatprep.subr.mxu0 0.0
    %337 = vmatpush1.msra.mxu0 0.0
    %338 = vmatprep.subr.mxu0 0.0
    %339 = vmatpush1.msra.mxu0 0.0
    %340 = vmatprep.subr.mxu0 0.0
    %341 = vmatpush1.msra.mxu0 0.0
    %342 = vmatprep.subr.mxu0 0.0
    %343 = vmatpush1.msra.mxu0 0.0
    %344 = vmatprep.subr.mxu0 0.0
    %345 = vmatpush1.msra.mxu0 0.0
    %346 = vmatprep.subr.mxu0 0.0
    %347 = vmatpush1.msra.mxu0 0.0
    %348 = vmatprep.subr.mxu0 0.0
    %349 = vmatpush1.msra.mxu0 0.0
    %350 = vmatprep.subr.mxu0 0.0
    %351 = vmatpush1.msra.mxu0 %v305
    %352 = vmatprep.subr.mxu0 0.0
    %353 = vmatpush1.msra.mxu0 %v304
    %354 = vmatprep.subr.mxu0 0.0
    %355 = vmatpush1.msra.mxu0 %v303
    %356 = vmatprep.subr.mxu0 0.0
    %357 = vmatpush1.msra.mxu0 %v302
    %358 = vmatprep.subr.mxu0 0.0
    %359 = vmatpush2.msra.mxu0 0.0
    %360 = vmatprep.subr.mxu0 0.0
    %361 = vmatpush2.msra.mxu0 0.0
    %362 = vmatprep.subr.mxu0 0.0
    %363 = vmatpush2.msra.mxu0 0.0
    %364 = vmatprep.subr.mxu0 0.0
    %365 = vmatpush2.msra.mxu0 0.0
    %366 = vmatprep.subr.mxu0 0.0
    %367 = vmatpush2.msra.mxu0 0.0
    %368 = vmatprep.subr.mxu0 0.0
    %369 = vmatpush2.msra.mxu0 0.0
    %370 = vmatprep.subr.mxu0 0.0
    %371 = vmatpush2.msra.mxu0 0.0
    %372 = vmatprep.subr.mxu0 0.0
    %373 = vmatpush2.msra.mxu0 0.0
    %374 = vmatprep.subr.mxu0 0.0
    %375 = vmatpush2.msra.mxu0 0.0
    %376 = vmatprep.subr.mxu0 0.0
    %377 = vmatpush2.msra.mxu0 0.0
    %378 = vmatprep.subr.mxu0 0.0
    %379 = vmatpush2.msra.mxu0 0.0
    %380 = vmatprep.subr.mxu0 0.0
    %381 = vmatpush2.msra.mxu0 0.0
    %382 = vmatprep.subr.mxu0 0.0
    %383 = vmatpush2.msra.mxu0 0.0
    %384 = vmatprep.subr.mxu0 0.0
    %385 = vmatpush2.msra.mxu0 0.0
    %386 = vmatprep.subr.mxu0 0.0
    %387 = vmatpush2.msra.mxu0 0.0
    %388 = vmatprep.subr.mxu0 0.0
    %389 = vmatpush2.msra.mxu0 0.0
    %390 = vmatprep.mubr.f32.mxu0 0.0
    %391 = vmatmul.mubr.f32.gmra.mxu0 %v315
    %v392 = vpop.f32.mrf.mxu0
    %v393 = vadd.f32 %v312, %v392
    %v394 = vpop.f32.mrf.mxu0
    %395 = vmatprep.mubr.f32.mxu0 0.0
    %396 = vmatmul.mubr.f32.gmra.mxu0 %v318
    %v397 = vpop.f32.mrf.mxu0
    %v398 = vadd.f32 %v312, %v397
    %v399 = vpop.f32.mrf.mxu0
    %400 = vmatprep.mubr.f32.mxu0 0.0
    %401 = vmatmul.mubr.f32.gmra.mxu0 %v321
    %v402 = vpop.f32.mrf.mxu0
    %v403 = vadd.f32 %v312, %v402
    %v404 = vpop.f32.mrf.mxu0
    %405 = vmatprep.mubr.f32.mxu0 0.0
    %406 = vmatmul.mubr.f32.gmra.mxu0 %v324
    %v407 = vpop.f32.mrf.mxu0
    %v408 = vadd.f32 %v312, %v407
    %v409 = vpop.f32.mrf.mxu0
    %410 = vdwg.mxu0
    %v411 = vmax.f32 %v393, 0.0
    %v412 = vmax.f32 %v398, 0.0
    %v413 = vmax.f32 %v403, 0.0
    %v414 = vmax.f32 %v408, 0.0
    %v415 = vld [vmem:[%s4] sm:$0xff]
    %v416 = vld [vmem:[%s4 + $0x8] sm:$0xff]
    %v417 = vld [vmem:[%s4 + $0x10] sm:$0xff]
    %v418 = vld [vmem:[%s4 + $0x18] sm:$0xff]
    %v419 = vld [vmem:[%s4 + $0x20] sm:$0xff]
    %v420 = vld [vmem:[%s4 + $0x28] sm:$0xff]
    %v421 = vld [vmem:[%s4 + $0x30] sm:$0xff]
    %v422 = vld [vmem:[%s4 + $0x38] sm:$0xff]
    %v423 = vld [vmem:[%s4 + $0x40] sm:$0xff]
    %v424 = vld [vmem:[%s4 + $0x48] sm:$0xff]
    %v425 = vld [vmem:[%s4 + $0x50] sm:$0xff]
    %v426 = vld [vmem:[%s4 + $0x58] sm:$0xff]
    %v427 = vld [vmem:[%s4 + $0x60] sm:$0xff]
    %v428 = vld [vmem:[%s4 + $0x68] sm:$0xff]
    %v429 = vld [vmem:[%s4 + $0x70] sm:$0xff]
    %v430 = vld [vmem:[%s4 + $0x78] sm:$0xff]
    %s431 = scalar_lea.vmem %s1, 6
    %v432 = vld [vmem:[%s431] sm:$0x1]
    %v434 = vlaneseq
    %v435 = vshrl.u32 %v434, 7
    %v436 = vsub.s32 0, %v435
    %v437 = vrot.slane %v432, %v436
    %439 = vmatprep.subr.mxu0 0.0
    %440 = vmatpush1.msra.mxu0 %v430
    %441 = vmatprep.subr.mxu0 0.0
    %442 = vmatpush1.msra.mxu0 %v429
    %443 = vmatprep.subr.mxu0 0.0
    %444 = vmatpush1.msra.mxu0 %v428
    %445 = vmatprep.subr.mxu0 0.0
    %446 = vmatpush1.msra.mxu0 %v427
    %447 = vmatprep.subr.mxu0 0.0
    %448 = vmatpush1.msra.mxu0 %v426
    %449 = vmatprep.subr.mxu0 0.0
    %450 = vmatpush1.msra.mxu0 %v425
    %451 = vmatprep.subr.mxu0 0.0
    %452 = vmatpush1.msra.mxu0 %v424
    %453 = vmatprep.subr.mxu0 0.0
    %454 = vmatpush1.msra.mxu0 %v423
    %455 = vmatprep.subr.mxu0 0.0
    %456 = vmatpush1.msra.mxu0 %v422
    %457 = vmatprep.subr.mxu0 0.0
    %458 = vmatpush1.msra.mxu0 %v421
    %459 = vmatprep.subr.mxu0 0.0
    %460 = vmatpush1.msra.mxu0 %v420
    %461 = vmatprep.subr.mxu0 0.0
    %462 = vmatpush1.msra.mxu0 %v419
    %463 = vmatprep.subr.mxu0 0.0
    %464 = vmatpush1.msra.mxu0 %v418
    %465 = vmatprep.subr.mxu0 0.0
    %466 = vmatpush1.msra.mxu0 %v417
    %467 = vmatprep.subr.mxu0 0.0
    %468 = vmatpush1.msra.mxu0 %v416
    %469 = vmatprep.subr.mxu0 0.0
    %470 = vmatpush1.msra.mxu0 %v415
    %471 = vmatprep.subr.mxu0 0.0
    %472 = vmatpush2.msra.mxu0 0.0
    %473 = vmatprep.subr.mxu0 0.0
    %474 = vmatpush2.msra.mxu0 0.0
    %475 = vmatprep.subr.mxu0 0.0
    %476 = vmatpush2.msra.mxu0 0.0
    %477 = vmatprep.subr.mxu0 0.0
    %478 = vmatpush2.msra.mxu0 0.0
    %479 = vmatprep.subr.mxu0 0.0
    %480 = vmatpush2.msra.mxu0 0.0
    %481 = vmatprep.subr.mxu0 0.0
    %482 = vmatpush2.msra.mxu0 0.0
    %483 = vmatprep.subr.mxu0 0.0
    %484 = vmatpush2.msra.mxu0 0.0
    %485 = vmatprep.subr.mxu0 0.0
    %486 = vmatpush2.msra.mxu0 0.0
    %487 = vmatprep.subr.mxu0 0.0
    %488 = vmatpush2.msra.mxu0 0.0
    %489 = vmatprep.subr.mxu0 0.0
    %490 = vmatpush2.msra.mxu0 0.0
    %491 = vmatprep.subr.mxu0 0.0
    %492 = vmatpush2.msra.mxu0 0.0
    %493 = vmatprep.subr.mxu0 0.0
    %494 = vmatpush2.msra.mxu0 0.0
    %495 = vmatprep.subr.mxu0 0.0
    %496 = vmatpush2.msra.mxu0 0.0
    %497 = vmatprep.subr.mxu0 0.0
    %498 = vmatpush2.msra.mxu0 0.0
    %499 = vmatprep.subr.mxu0 0.0
    %500 = vmatpush2.msra.mxu0 0.0
    %501 = vmatprep.subr.mxu0 0.0
    %502 = vmatpush2.msra.mxu0 0.0
    %503 = vmatprep.mubr.f32.mxu0 0.0
    %504 = vmatmul.mubr.f32.gmra.mxu0 %v411
    %v505 = vpop.f32.mrf.mxu0
    %v506 = vadd.f32 %v437, %v505
    %v507 = vpop.f32.mrf.mxu0
    %508 = vmatprep.mubr.f32.mxu0 0.0
    %509 = vmatmul.mubr.f32.gmra.mxu0 %v412
    %v510 = vpop.f32.mrf.mxu0
    %v511 = vadd.f32 %v437, %v510
    %v512 = vpop.f32.mrf.mxu0
    %513 = vmatprep.mubr.f32.mxu0 0.0
    %514 = vmatmul.mubr.f32.gmra.mxu0 %v413
    %v515 = vpop.f32.mrf.mxu0
    %v516 = vadd.f32 %v437, %v515
    %v517 = vpop.f32.mrf.mxu0
    %518 = vmatprep.mubr.f32.mxu0 0.0
    %519 = vmatmul.mubr.f32.gmra.mxu0 %v414
    %v520 = vpop.f32.mrf.mxu0
    %v521 = vadd.f32 %v437, %v520
    %v522 = vpop.f32.mrf.mxu0
    %523 = vdwg.mxu0
    %v525 = vsel %vm228, %v506, 0
    %v528 = vsel %vm228, %v511, 0
    %530 = vmatprep.subr.mxu0 0.0
    %531 = vmatpush1.xpose.msra.mxu0 0.0
    %532 = vmatprep.subr.mxu0 0.0
    %533 = vmatpush1.xpose.msra.mxu0 0.0
    %534 = vmatprep.subr.mxu0 0.0
    %535 = vmatpush1.xpose.msra.mxu0 0.0
    %536 = vmatprep.subr.mxu0 0.0
    %537 = vmatpush1.xpose.msra.mxu0 0.0
    %538 = vmatprep.subr.mxu0 0.0
    %539 = vmatpush1.xpose.msra.mxu0 0.0
    %540 = vmatprep.subr.mxu0 0.0
    %541 = vmatpush1.xpose.msra.mxu0 0.0
    %542 = vmatprep.subr.mxu0 0.0
    %543 = vmatpush1.xpose.msra.mxu0 0.0
    %544 = vmatprep.subr.mxu0 0.0
    %545 = vmatpush1.xpose.msra.mxu0 0.0
    %546 = vmatprep.subr.mxu0 0.0
    %547 = vmatpush1.xpose.msra.mxu0 0.0
    %548 = vmatprep.subr.mxu0 0.0
    %549 = vmatpush1.xpose.msra.mxu0 0.0
    %550 = vmatprep.subr.mxu0 0.0
    %551 = vmatpush1.xpose.msra.mxu0 0.0
    %552 = vmatprep.subr.mxu0 0.0
    %553 = vmatpush1.xpose.msra.mxu0 0.0
    %554 = vmatprep.subr.mxu0 0.0
    %555 = vmatpush1.xpose.msra.mxu0 0.0
    %556 = vmatprep.subr.mxu0 0.0
    %557 = vmatpush1.xpose.msra.mxu0 0.0
    %558 = vmatprep.subr.mxu0 0.0
    %559 = vmatpush1.xpose.msra.mxu0 %v528
    %560 = vmatprep.subr.mxu0 0.0
    %561 = vmatpush1.xpose.msra.mxu0 %v525
    %562 = vmatprep.subr.mxu0 0.0
    %563 = vmatpush2.xpose.msra.mxu0 0.0
    %564 = vmatprep.subr.mxu0 0.0
    %565 = vmatpush2.xpose.msra.mxu0 0.0
    %566 = vmatprep.subr.mxu0 0.0
    %567 = vmatpush2.xpose.msra.mxu0 0.0
    %568 = vmatprep.subr.mxu0 0.0
    %569 = vmatpush2.xpose.msra.mxu0 0.0
    %570 = vmatprep.subr.mxu0 0.0
    %571 = vmatpush2.xpose.msra.mxu0 0.0
    %572 = vmatprep.subr.mxu0 0.0
    %573 = vmatpush2.xpose.msra.mxu0 0.0
    %574 = vmatprep.subr.mxu0 0.0
    %575 = vmatpush2.xpose.msra.mxu0 0.0
    %576 = vmatprep.subr.mxu0 0.0
    %577 = vmatpush2.xpose.msra.mxu0 0.0
    %578 = vmatprep.subr.mxu0 0.0
    %579 = vmatpush2.xpose.msra.mxu0 0.0
    %580 = vmatprep.subr.mxu0 0.0
    %581 = vmatpush2.xpose.msra.mxu0 0.0
    %582 = vmatprep.subr.mxu0 0.0
    %583 = vmatpush2.xpose.msra.mxu0 0.0
    %584 = vmatprep.subr.mxu0 0.0
    %585 = vmatpush2.xpose.msra.mxu0 0.0
    %586 = vmatprep.subr.mxu0 0.0
    %587 = vmatpush2.xpose.msra.mxu0 0.0
    %588 = vmatprep.subr.mxu0 0.0
    %589 = vmatpush2.xpose.msra.mxu0 0.0
    %590 = vmatprep.subr.mxu0 0.0
    %591 = vmatpush2.xpose.msra.mxu0 0.0
    %592 = vmatprep.subr.mxu0 0.0
    %593 = vmatpush2.xpose.msra.mxu0 0.0
    %594 = vmatprep.mubr.f32.mxu0 0.0
    %595 = vmatmul.mubr.f32.gmra.mxu0 %v525
    %v596 = vpop.f32.mrf.mxu0
    %v597 = vadd.f32 0.0, %v596
    %v598 = vpop.f32.mrf.mxu0
    %599 = vmatprep.mubr.f32.mxu0 0.0
    %600 = vmatmul.mubr.f32.gmra.mxu0 %v528
    %v601 = vpop.f32.mrf.mxu0
    %v602 = vadd.f32 0.0, %v601
    %v603 = vpop.f32.mrf.mxu0
    %604 = vdwg.mxu0
    %v606 = vsel %vm228, %v516, 0
    %v609 = vsel %vm228, %v521, 0
    %611 = vmatprep.subr.mxu0 0.0
    %612 = vmatpush1.xpose.msra.mxu0 0.0
    %613 = vmatprep.subr.mxu0 0.0
    %614 = vmatpush1.xpose.msra.mxu0 0.0
    %615 = vmatprep.subr.mxu0 0.0
    %616 = vmatpush1.xpose.msra.mxu0 0.0
    %617 = vmatprep.subr.mxu0 0.0
    %618 = vmatpush1.xpose.msra.mxu0 0.0
    %619 = vmatprep.subr.mxu0 0.0
    %620 = vmatpush1.xpose.msra.mxu0 0.0
    %621 = vmatprep.subr.mxu0 0.0
    %622 = vmatpush1.xpose.msra.mxu0 0.0
    %623 = vmatprep.subr.mxu0 0.0
    %624 = vmatpush1.xpose.msra.mxu0 0.0
    %625 = vmatprep.subr.mxu0 0.0
    %626 = vmatpush1.xpose.msra.mxu0 0.0
    %627 = vmatprep.subr.mxu0 0.0
    %628 = vmatpush1.xpose.msra.mxu0 0.0
    %629 = vmatprep.subr.mxu0 0.0
    %630 = vmatpush1.xpose.msra.mxu0 0.0
    %631 = vmatprep.subr.mxu0 0.0
    %632 = vmatpush1.xpose.msra.mxu0 0.0
    %633 = vmatprep.subr.mxu0 0.0
    %634 = vmatpush1.xpose.msra.mxu0 0.0
    %635 = vmatprep.subr.mxu0 0.0
    %636 = vmatpush1.xpose.msra.mxu0 0.0
    %637 = vmatprep.subr.mxu0 0.0
    %638 = vmatpush1.xpose.msra.mxu0 0.0
    %639 = vmatprep.subr.mxu0 0.0
    %640 = vmatpush1.xpose.msra.mxu0 %v609
    %641 = vmatprep.subr.mxu0 0.0
    %642 = vmatpush1.xpose.msra.mxu0 %v606
    %643 = vmatprep.subr.mxu0 0.0
    %644 = vmatpush2.xpose.msra.mxu0 0.0
    %645 = vmatprep.subr.mxu0 0.0
    %646 = vmatpush2.xpose.msra.mxu0 0.0
    %647 = vmatprep.subr.mxu0 0.0
    %648 = vmatpush2.xpose.msra.mxu0 0.0
    %649 = vmatprep.subr.mxu0 0.0
    %650 = vmatpush2.xpose.msra.mxu0 0.0
    %651 = vmatprep.subr.mxu0 0.0
    %652 = vmatpush2.xpose.msra.mxu0 0.0
    %653 = vmatprep.subr.mxu0 0.0
    %654 = vmatpush2.xpose.msra.mxu0 0.0
    %655 = vmatprep.subr.mxu0 0.0
    %656 = vmatpush2.xpose.msra.mxu0 0.0
    %657 = vmatprep.subr.mxu0 0.0
    %658 = vmatpush2.xpose.msra.mxu0 0.0
    %659 = vmatprep.subr.mxu0 0.0
    %660 = vmatpush2.xpose.msra.mxu0 0.0
    %661 = vmatprep.subr.mxu0 0.0
    %662 = vmatpush2.xpose.msra.mxu0 0.0
    %663 = vmatprep.subr.mxu0 0.0
    %664 = vmatpush2.xpose.msra.mxu0 0.0
    %665 = vmatprep.subr.mxu0 0.0
    %666 = vmatpush2.xpose.msra.mxu0 0.0
    %667 = vmatprep.subr.mxu0 0.0
    %668 = vmatpush2.xpose.msra.mxu0 0.0
    %669 = vmatprep.subr.mxu0 0.0
    %670 = vmatpush2.xpose.msra.mxu0 0.0
    %671 = vmatprep.subr.mxu0 0.0
    %672 = vmatpush2.xpose.msra.mxu0 0.0
    %673 = vmatprep.subr.mxu0 0.0
    %674 = vmatpush2.xpose.msra.mxu0 0.0
    %675 = vmatprep.mubr.f32.mxu0 0.0
    %676 = vmatmul.mubr.f32.gmra.mxu0 %v606
    %v677 = vpop.f32.mrf.mxu0
    %v678 = vadd.f32 0.0, %v677
    %v679 = vpop.f32.mrf.mxu0
    %680 = vmatprep.mubr.f32.mxu0 0.0
    %681 = vmatmul.mubr.f32.gmra.mxu0 %v609
    %v682 = vpop.f32.mrf.mxu0
    %v683 = vadd.f32 0.0, %v682
    %v684 = vpop.f32.mrf.mxu0
    %685 = vdwg.mxu0
    %vm686 = vcmask 130048
    %v687 = vsel %vm686, %v597, -inf
    %688 = vmax.xlane.f32.xlu0 %v687
    %v689 = vpop.xlane.xlu0 %688
    %v690 = vsel %vm686, %v602, -inf
    %691 = vmax.xlane.f32.xlu0 %v690
    %v692 = vpop.xlane.xlu0 %691
    %v693 = vsel %vm686, %v678, -inf
    %694 = vmax.xlane.f32.xlu0 %v693
    %v695 = vpop.xlane.xlu0 %694
    %v696 = vsel %vm686, %v683, -inf
    %697 = vmax.xlane.f32.xlu0 %v696
    %v698 = vpop.xlane.xlu0 %697
    %v699 = vsub.f32 %v597, %v689
    %v700 = vsub.f32 %v602, %v692
    %v701 = vsub.f32 %v678, %v695
    %v702 = vsub.f32 %v683, %v698
    %v703 = vmul.f32 %v699, 1.442695
    %v704 = vpow.pop %v703
    %v705 = vmul.f32 %v700, 1.442695
    %v706 = vpow.pop %v705
    %v707 = vmul.f32 %v701, 1.442695
    %v708 = vpow.pop %v707
    %v709 = vmul.f32 %v702, 1.442695
    %v710 = vpow.pop %v709
    %v711 = vsel %vm686, %v704, 0.0
    %712 = vadd.xlane.f32.xlu0 %v711
    %v713 = vpop.xlane.xlu0 %712
    %v714 = vsel %vm686, %v706, 0.0
    %715 = vadd.xlane.f32.xlu0 %v714
    %v716 = vpop.xlane.xlu0 %715
    %v717 = vsel %vm686, %v708, 0.0
    %718 = vadd.xlane.f32.xlu0 %v717
    %v719 = vpop.xlane.xlu0 %718
    %v720 = vsel %vm686, %v710, 0.0
    %721 = vadd.xlane.f32.xlu0 %v720
    %v722 = vpop.xlane.xlu0 %721
    %v723 = vrcp.pop %v713
    %v724 = vrcp.pop %v716
    %v725 = vrcp.pop %v719
    %v726 = vrcp.pop %v722
    %v727 = vmul.f32 %v704, %v723
    %v728 = vmul.f32 %v706, %v724
    %v729 = vmul.f32 %v708, %v725
    %v730 = vmul.f32 %v710, %v726
    %v731 = vld [vmem:[%s5] sm:$0xff]
    %v732 = vld [vmem:[%s5 + $0x8] sm:$0xff]
    %s733 = scalar_lea.vmem %s5, 16
    %v734 = vld [vmem:[%s733] sm:$0xff]
    %v735 = vld [vmem:[%s733 + $0x8] sm:$0xff]
    %v738 = vrot.slane %v727, 1
    %vm739 = vcmask 1041409
    %v740 = vsel %vm739, %v729, %v738
    %v741 = vsel %vm686, %v740, 0
    %743 = vmatprep.subr.mxu0 0.0
    %744 = vmatpush1.msra.mxu0 0.0
    %745 = vmatprep.subr.mxu0 0.0
    %746 = vmatpush1.msra.mxu0 0.0
    %747 = vmatprep.subr.mxu0 0.0
    %748 = vmatpush1.msra.mxu0 0.0
    %749 = vmatprep.subr.mxu0 0.0
    %750 = vmatpush1.msra.mxu0 0.0
    %751 = vmatprep.subr.mxu0 0.0
    %752 = vmatpush1.msra.mxu0 0.0
    %753 = vmatprep.subr.mxu0 0.0
    %754 = vmatpush1.msra.mxu0 0.0
    %755 = vmatprep.subr.mxu0 0.0
    %756 = vmatpush1.msra.mxu0 0.0
    %757 = vmatprep.subr.mxu0 0.0
    %758 = vmatpush1.msra.mxu0 0.0
    %759 = vmatprep.subr.mxu0 0.0
    %760 = vmatpush1.msra.mxu0 0.0
    %761 = vmatprep.subr.mxu0 0.0
    %762 = vmatpush1.msra.mxu0 0.0
    %763 = vmatprep.subr.mxu0 0.0
    %764 = vmatpush1.msra.mxu0 0.0
    %765 = vmatprep.subr.mxu0 0.0
    %766 = vmatpush1.msra.mxu0 0.0
    %767 = vmatprep.subr.mxu0 0.0
    %768 = vmatpush1.msra.mxu0 0.0
    %769 = vmatprep.subr.mxu0 0.0
    %770 = vmatpush1.msra.mxu0 0.0
    %771 = vmatprep.subr.mxu0 0.0
    %772 = vmatpush1.msra.mxu0 %v735
    %773 = vmatprep.subr.mxu0 0.0
    %774 = vmatpush1.msra.mxu0 %v734
    %775 = vmatprep.subr.mxu0 0.0
    %776 = vmatpush2.msra.mxu0 0.0
    %777 = vmatprep.subr.mxu0 0.0
    %778 = vmatpush2.msra.mxu0 0.0
    %779 = vmatprep.subr.mxu0 0.0
    %780 = vmatpush2.msra.mxu0 0.0
    %781 = vmatprep.subr.mxu0 0.0
    %782 = vmatpush2.msra.mxu0 0.0
    %783 = vmatprep.subr.mxu0 0.0
    %784 = vmatpush2.msra.mxu0 0.0
    %785 = vmatprep.subr.mxu0 0.0
    %786 = vmatpush2.msra.mxu0 0.0
    %787 = vmatprep.subr.mxu0 0.0
    %788 = vmatpush2.msra.mxu0 0.0
    %789 = vmatprep.subr.mxu0 0.0
    %790 = vmatpush2.msra.mxu0 0.0
    %791 = vmatprep.subr.mxu0 0.0
    %792 = vmatpush2.msra.mxu0 0.0
    %793 = vmatprep.subr.mxu0 0.0
    %794 = vmatpush2.msra.mxu0 0.0
    %795 = vmatprep.subr.mxu0 0.0
    %796 = vmatpush2.msra.mxu0 0.0
    %797 = vmatprep.subr.mxu0 0.0
    %798 = vmatpush2.msra.mxu0 0.0
    %799 = vmatprep.subr.mxu0 0.0
    %800 = vmatpush2.msra.mxu0 0.0
    %801 = vmatprep.subr.mxu0 0.0
    %802 = vmatpush2.msra.mxu0 0.0
    %803 = vmatprep.subr.mxu0 0.0
    %804 = vmatpush2.msra.mxu0 0.0
    %805 = vmatprep.subr.mxu0 0.0
    %806 = vmatpush2.msra.mxu0 0.0
    %807 = vmatprep.mubr.f32.mxu0 0.0
    %808 = vmatmul.mubr.f32.gmra.mxu0 %v741
    %v809 = vpop.f32.mrf.mxu0
    %v810 = vadd.f32 0.0, %v809
    %v811 = vpop.f32.mrf.mxu0
    %812 = vdwg.mxu0
    %v813 = vrot.slane %v729, 7
    %v814 = vsel %vm739, %v813, %v727
    %v815 = vsel %vm686, %v814, 0
    %817 = vmatprep.subr.mxu0 0.0
    %818 = vmatpush1.msra.mxu0 0.0
    %819 = vmatprep.subr.mxu0 0.0
    %820 = vmatpush1.msra.mxu0 0.0
    %821 = vmatprep.subr.mxu0 0.0
    %822 = vmatpush1.msra.mxu0 0.0
    %823 = vmatprep.subr.mxu0 0.0
    %824 = vmatpush1.msra.mxu0 0.0
    %825 = vmatprep.subr.mxu0 0.0
    %826 = vmatpush1.msra.mxu0 0.0
    %827 = vmatprep.subr.mxu0 0.0
    %828 = vmatpush1.msra.mxu0 0.0
    %829 = vmatprep.subr.mxu0 0.0
    %830 = vmatpush1.msra.mxu0 0.0
    %831 = vmatprep.subr.mxu0 0.0
    %832 = vmatpush1.msra.mxu0 0.0
    %833 = vmatprep.subr.mxu0 0.0
    %834 = vmatpush1.msra.mxu0 0.0
    %835 = vmatprep.subr.mxu0 0.0
    %836 = vmatpush1.msra.mxu0 0.0
    %837 = vmatprep.subr.mxu0 0.0
    %838 = vmatpush1.msra.mxu0 0.0
    %839 = vmatprep.subr.mxu0 0.0
    %840 = vmatpush1.msra.mxu0 0.0
    %841 = vmatprep.subr.mxu0 0.0
    %842 = vmatpush1.msra.mxu0 0.0
    %843 = vmatprep.subr.mxu0 0.0
    %844 = vmatpush1.msra.mxu0 0.0
    %845 = vmatprep.subr.mxu0 0.0
    %846 = vmatpush1.msra.mxu0 %v732
    %847 = vmatprep.subr.mxu0 0.0
    %848 = vmatpush1.msra.mxu0 %v731
    %849 = vmatprep.subr.mxu0 0.0
    %850 = vmatpush2.msra.mxu0 0.0
    %851 = vmatprep.subr.mxu0 0.0
    %852 = vmatpush2.msra.mxu0 0.0
    %853 = vmatprep.subr.mxu0 0.0
    %854 = vmatpush2.msra.mxu0 0.0
    %855 = vmatprep.subr.mxu0 0.0
    %856 = vmatpush2.msra.mxu0 0.0
    %857 = vmatprep.subr.mxu0 0.0
    %858 = vmatpush2.msra.mxu0 0.0
    %859 = vmatprep.subr.mxu0 0.0
    %860 = vmatpush2.msra.mxu0 0.0
    %861 = vmatprep.subr.mxu0 0.0
    %862 = vmatpush2.msra.mxu0 0.0
    %863 = vmatprep.subr.mxu0 0.0
    %864 = vmatpush2.msra.mxu0 0.0
    %865 = vmatprep.subr.mxu0 0.0
    %866 = vmatpush2.msra.mxu0 0.0
    %867 = vmatprep.subr.mxu0 0.0
    %868 = vmatpush2.msra.mxu0 0.0
    %869 = vmatprep.subr.mxu0 0.0
    %870 = vmatpush2.msra.mxu0 0.0
    %871 = vmatprep.subr.mxu0 0.0
    %872 = vmatpush2.msra.mxu0 0.0
    %873 = vmatprep.subr.mxu0 0.0
    %874 = vmatpush2.msra.mxu0 0.0
    %875 = vmatprep.subr.mxu0 0.0
    %876 = vmatpush2.msra.mxu0 0.0
    %877 = vmatprep.subr.mxu0 0.0
    %878 = vmatpush2.msra.mxu0 0.0
    %879 = vmatprep.subr.mxu0 0.0
    %880 = vmatpush2.msra.mxu0 0.0
    %881 = vmatprep.mubr.f32.mxu0 0.0
    %882 = vmatmul.mubr.f32.gmra.mxu0 %v815
    %v883 = vpop.f32.mrf.mxu0
    %v884 = vadd.f32 %v810, %v883
    %v885 = vpop.f32.mrf.mxu0
    %886 = vdwg.mxu0
    %s887 = scalar_lea.vmem %s5, 32
    %v888 = vld [vmem:[%s887] sm:$0xff]
    %v889 = vld [vmem:[%s887 + $0x8] sm:$0xff]
    %v890 = vrot.slane %v727, 2
    %v891 = vrot.slane %v729, 1
    %v892 = vsel %vm739, %v891, %v890
    %v893 = vsel %vm686, %v892, 0
    %895 = vmatprep.subr.mxu0 0.0
    %896 = vmatpush1.msra.mxu0 0.0
    %897 = vmatprep.subr.mxu0 0.0
    %898 = vmatpush1.msra.mxu0 0.0
    %899 = vmatprep.subr.mxu0 0.0
    %900 = vmatpush1.msra.mxu0 0.0
    %901 = vmatprep.subr.mxu0 0.0
    %902 = vmatpush1.msra.mxu0 0.0
    %903 = vmatprep.subr.mxu0 0.0
    %904 = vmatpush1.msra.mxu0 0.0
    %905 = vmatprep.subr.mxu0 0.0
    %906 = vmatpush1.msra.mxu0 0.0
    %907 = vmatprep.subr.mxu0 0.0
    %908 = vmatpush1.msra.mxu0 0.0
    %909 = vmatprep.subr.mxu0 0.0
    %910 = vmatpush1.msra.mxu0 0.0
    %911 = vmatprep.subr.mxu0 0.0
    %912 = vmatpush1.msra.mxu0 0.0
    %913 = vmatprep.subr.mxu0 0.0
    %914 = vmatpush1.msra.mxu0 0.0
    %915 = vmatprep.subr.mxu0 0.0
    %916 = vmatpush1.msra.mxu0 0.0
    %917 = vmatprep.subr.mxu0 0.0
    %918 = vmatpush1.msra.mxu0 0.0
    %919 = vmatprep.subr.mxu0 0.0
    %920 = vmatpush1.msra.mxu0 0.0
    %921 = vmatprep.subr.mxu0 0.0
    %922 = vmatpush1.msra.mxu0 0.0
    %923 = vmatprep.subr.mxu0 0.0
    %924 = vmatpush1.msra.mxu0 %v889
    %925 = vmatprep.subr.mxu0 0.0
    %926 = vmatpush1.msra.mxu0 %v888
    %927 = vmatprep.subr.mxu0 0.0
    %928 = vmatpush2.msra.mxu0 0.0
    %929 = vmatprep.subr.mxu0 0.0
    %930 = vmatpush2.msra.mxu0 0.0
    %931 = vmatprep.subr.mxu0 0.0
    %932 = vmatpush2.msra.mxu0 0.0
    %933 = vmatprep.subr.mxu0 0.0
    %934 = vmatpush2.msra.mxu0 0.0
    %935 = vmatprep.subr.mxu0 0.0
    %936 = vmatpush2.msra.mxu0 0.0
    %937 = vmatprep.subr.mxu0 0.0
    %938 = vmatpush2.msra.mxu0 0.0
    %939 = vmatprep.subr.mxu0 0.0
    %940 = vmatpush2.msra.mxu0 0.0
    %941 = vmatprep.subr.mxu0 0.0
    %942 = vmatpush2.msra.mxu0 0.0
    %943 = vmatprep.subr.mxu0 0.0
    %944 = vmatpush2.msra.mxu0 0.0
    %945 = vmatprep.subr.mxu0 0.0
    %946 = vmatpush2.msra.mxu0 0.0
    %947 = vmatprep.subr.mxu0 0.0
    %948 = vmatpush2.msra.mxu0 0.0
    %949 = vmatprep.subr.mxu0 0.0
    %950 = vmatpush2.msra.mxu0 0.0
    %951 = vmatprep.subr.mxu0 0.0
    %952 = vmatpush2.msra.mxu0 0.0
    %953 = vmatprep.subr.mxu0 0.0
    %954 = vmatpush2.msra.mxu0 0.0
    %955 = vmatprep.subr.mxu0 0.0
    %956 = vmatpush2.msra.mxu0 0.0
    %957 = vmatprep.subr.mxu0 0.0
    %958 = vmatpush2.msra.mxu0 0.0
    %959 = vmatprep.mubr.f32.mxu0 0.0
    %960 = vmatmul.mubr.f32.gmra.mxu0 %v893
    %v961 = vpop.f32.mrf.mxu0
    %v962 = vadd.f32 0.0, %v961
    %v963 = vpop.f32.mrf.mxu0
    %964 = vdwg.mxu0
    %v965 = vadd.f32 %v884, %v962
    %s966 = scalar_lea.vmem %s5, 48
    %v967 = vld [vmem:[%s966] sm:$0xff]
    %v968 = vld [vmem:[%s966 + $0x8] sm:$0xff]
    %v969 = vrot.slane %v727, 3
    %v970 = vrot.slane %v729, 2
    %v971 = vsel %vm739, %v970, %v969
    %v972 = vsel %vm686, %v971, 0
    %974 = vmatprep.subr.mxu0 0.0
    %975 = vmatpush1.msra.mxu0 0.0
    %976 = vmatprep.subr.mxu0 0.0
    %977 = vmatpush1.msra.mxu0 0.0
    %978 = vmatprep.subr.mxu0 0.0
    %979 = vmatpush1.msra.mxu0 0.0
    %980 = vmatprep.subr.mxu0 0.0
    %981 = vmatpush1.msra.mxu0 0.0
    %982 = vmatprep.subr.mxu0 0.0
    %983 = vmatpush1.msra.mxu0 0.0
    %984 = vmatprep.subr.mxu0 0.0
    %985 = vmatpush1.msra.mxu0 0.0
    %986 = vmatprep.subr.mxu0 0.0
    %987 = vmatpush1.msra.mxu0 0.0
    %988 = vmatprep.subr.mxu0 0.0
    %989 = vmatpush1.msra.mxu0 0.0
    %990 = vmatprep.subr.mxu0 0.0
    %991 = vmatpush1.msra.mxu0 0.0
    %992 = vmatprep.subr.mxu0 0.0
    %993 = vmatpush1.msra.mxu0 0.0
    %994 = vmatprep.subr.mxu0 0.0
    %995 = vmatpush1.msra.mxu0 0.0
    %996 = vmatprep.subr.mxu0 0.0
    %997 = vmatpush1.msra.mxu0 0.0
    %998 = vmatprep.subr.mxu0 0.0
    %999 = vmatpush1.msra.mxu0 0.0
    %1000 = vmatprep.subr.mxu0 0.0
    %1001 = vmatpush1.msra.mxu0 0.0
    %1002 = vmatprep.subr.mxu0 0.0
    %1003 = vmatpush1.msra.mxu0 %v968
    %1004 = vmatprep.subr.mxu0 0.0
    %1005 = vmatpush1.msra.mxu0 %v967
    %1006 = vmatprep.subr.mxu0 0.0
    %1007 = vmatpush2.msra.mxu0 0.0
    %1008 = vmatprep.subr.mxu0 0.0
    %1009 = vmatpush2.msra.mxu0 0.0
    %1010 = vmatprep.subr.mxu0 0.0
    %1011 = vmatpush2.msra.mxu0 0.0
    %1012 = vmatprep.subr.mxu0 0.0
    %1013 = vmatpush2.msra.mxu0 0.0
    %1014 = vmatprep.subr.mxu0 0.0
    %1015 = vmatpush2.msra.mxu0 0.0
    %1016 = vmatprep.subr.mxu0 0.0
    %1017 = vmatpush2.msra.mxu0 0.0
    %1018 = vmatprep.subr.mxu0 0.0
    %1019 = vmatpush2.msra.mxu0 0.0
    %1020 = vmatprep.subr.mxu0 0.0
    %1021 = vmatpush2.msra.mxu0 0.0
    %1022 = vmatprep.subr.mxu0 0.0
    %1023 = vmatpush2.msra.mxu0 0.0
    %1024 = vmatprep.subr.mxu0 0.0
    %1025 = vmatpush2.msra.mxu0 0.0
    %1026 = vmatprep.subr.mxu0 0.0
    %1027 = vmatpush2.msra.mxu0 0.0
    %1028 = vmatprep.subr.mxu0 0.0
    %1029 = vmatpush2.msra.mxu0 0.0
    %1030 = vmatprep.subr.mxu0 0.0
    %1031 = vmatpush2.msra.mxu0 0.0
    %1032 = vmatprep.subr.mxu0 0.0
    %1033 = vmatpush2.msra.mxu0 0.0
    %1034 = vmatprep.subr.mxu0 0.0
    %1035 = vmatpush2.msra.mxu0 0.0
    %1036 = vmatprep.subr.mxu0 0.0
    %1037 = vmatpush2.msra.mxu0 0.0
    %1038 = vmatprep.mubr.f32.mxu0 0.0
    %1039 = vmatmul.mubr.f32.gmra.mxu0 %v972
    %v1040 = vpop.f32.mrf.mxu0
    %v1041 = vadd.f32 0.0, %v1040
    %v1042 = vpop.f32.mrf.mxu0
    %1043 = vdwg.mxu0
    %v1044 = vadd.f32 %v965, %v1041
    %s1045 = scalar_lea.vmem %s5, 64
    %v1046 = vld [vmem:[%s1045] sm:$0xff]
    %v1047 = vld [vmem:[%s1045 + $0x8] sm:$0xff]
    %v1048 = vrot.slane %v727, 4
    %v1049 = vrot.slane %v729, 3
    %v1050 = vsel %vm739, %v1049, %v1048
    %v1051 = vsel %vm686, %v1050, 0
    %1053 = vmatprep.subr.mxu0 0.0
    %1054 = vmatpush1.msra.mxu0 0.0
    %1055 = vmatprep.subr.mxu0 0.0
    %1056 = vmatpush1.msra.mxu0 0.0
    %1057 = vmatprep.subr.mxu0 0.0
    %1058 = vmatpush1.msra.mxu0 0.0
    %1059 = vmatprep.subr.mxu0 0.0
    %1060 = vmatpush1.msra.mxu0 0.0
    %1061 = vmatprep.subr.mxu0 0.0
    %1062 = vmatpush1.msra.mxu0 0.0
    %1063 = vmatprep.subr.mxu0 0.0
    %1064 = vmatpush1.msra.mxu0 0.0
    %1065 = vmatprep.subr.mxu0 0.0
    %1066 = vmatpush1.msra.mxu0 0.0
    %1067 = vmatprep.subr.mxu0 0.0
    %1068 = vmatpush1.msra.mxu0 0.0
    %1069 = vmatprep.subr.mxu0 0.0
    %1070 = vmatpush1.msra.mxu0 0.0
    %1071 = vmatprep.subr.mxu0 0.0
    %1072 = vmatpush1.msra.mxu0 0.0
    %1073 = vmatprep.subr.mxu0 0.0
    %1074 = vmatpush1.msra.mxu0 0.0
    %1075 = vmatprep.subr.mxu0 0.0
    %1076 = vmatpush1.msra.mxu0 0.0
    %1077 = vmatprep.subr.mxu0 0.0
    %1078 = vmatpush1.msra.mxu0 0.0
    %1079 = vmatprep.subr.mxu0 0.0
    %1080 = vmatpush1.msra.mxu0 0.0
    %1081 = vmatprep.subr.mxu0 0.0
    %1082 = vmatpush1.msra.mxu0 %v1047
    %1083 = vmatprep.subr.mxu0 0.0
    %1084 = vmatpush1.msra.mxu0 %v1046
    %1085 = vmatprep.subr.mxu0 0.0
    %1086 = vmatpush2.msra.mxu0 0.0
    %1087 = vmatprep.subr.mxu0 0.0
    %1088 = vmatpush2.msra.mxu0 0.0
    %1089 = vmatprep.subr.mxu0 0.0
    %1090 = vmatpush2.msra.mxu0 0.0
    %1091 = vmatprep.subr.mxu0 0.0
    %1092 = vmatpush2.msra.mxu0 0.0
    %1093 = vmatprep.subr.mxu0 0.0
    %1094 = vmatpush2.msra.mxu0 0.0
    %1095 = vmatprep.subr.mxu0 0.0
    %1096 = vmatpush2.msra.mxu0 0.0
    %1097 = vmatprep.subr.mxu0 0.0
    %1098 = vmatpush2.msra.mxu0 0.0
    %1099 = vmatprep.subr.mxu0 0.0
    %1100 = vmatpush2.msra.mxu0 0.0
    %1101 = vmatprep.subr.mxu0 0.0
    %1102 = vmatpush2.msra.mxu0 0.0
    %1103 = vmatprep.subr.mxu0 0.0
    %1104 = vmatpush2.msra.mxu0 0.0
    %1105 = vmatprep.subr.mxu0 0.0
    %1106 = vmatpush2.msra.mxu0 0.0
    %1107 = vmatprep.subr.mxu0 0.0
    %1108 = vmatpush2.msra.mxu0 0.0
    %1109 = vmatprep.subr.mxu0 0.0
    %1110 = vmatpush2.msra.mxu0 0.0
    %1111 = vmatprep.subr.mxu0 0.0
    %1112 = vmatpush2.msra.mxu0 0.0
    %1113 = vmatprep.subr.mxu0 0.0
    %1114 = vmatpush2.msra.mxu0 0.0
    %1115 = vmatprep.subr.mxu0 0.0
    %1116 = vmatpush2.msra.mxu0 0.0
    %1117 = vmatprep.mubr.f32.mxu0 0.0
    %1118 = vmatmul.mubr.f32.gmra.mxu0 %v1051
    %v1119 = vpop.f32.mrf.mxu0
    %v1120 = vadd.f32 0.0, %v1119
    %v1121 = vpop.f32.mrf.mxu0
    %1122 = vdwg.mxu0
    %v1123 = vadd.f32 %v1044, %v1120
    %s1124 = scalar_lea.vmem %s5, 80
    %v1125 = vld [vmem:[%s1124] sm:$0xff]
    %v1126 = vld [vmem:[%s1124 + $0x8] sm:$0xff]
    %v1127 = vrot.slane %v727, 5
    %v1128 = vrot.slane %v729, 4
    %v1129 = vsel %vm739, %v1128, %v1127
    %v1130 = vsel %vm686, %v1129, 0
    %1132 = vmatprep.subr.mxu0 0.0
    %1133 = vmatpush1.msra.mxu0 0.0
    %1134 = vmatprep.subr.mxu0 0.0
    %1135 = vmatpush1.msra.mxu0 0.0
    %1136 = vmatprep.subr.mxu0 0.0
    %1137 = vmatpush1.msra.mxu0 0.0
    %1138 = vmatprep.subr.mxu0 0.0
    %1139 = vmatpush1.msra.mxu0 0.0
    %1140 = vmatprep.subr.mxu0 0.0
    %1141 = vmatpush1.msra.mxu0 0.0
    %1142 = vmatprep.subr.mxu0 0.0
    %1143 = vmatpush1.msra.mxu0 0.0
    %1144 = vmatprep.subr.mxu0 0.0
    %1145 = vmatpush1.msra.mxu0 0.0
    %1146 = vmatprep.subr.mxu0 0.0
    %1147 = vmatpush1.msra.mxu0 0.0
    %1148 = vmatprep.subr.mxu0 0.0
    %1149 = vmatpush1.msra.mxu0 0.0
    %1150 = vmatprep.subr.mxu0 0.0
    %1151 = vmatpush1.msra.mxu0 0.0
    %1152 = vmatprep.subr.mxu0 0.0
    %1153 = vmatpush1.msra.mxu0 0.0
    %1154 = vmatprep.subr.mxu0 0.0
    %1155 = vmatpush1.msra.mxu0 0.0
    %1156 = vmatprep.subr.mxu0 0.0
    %1157 = vmatpush1.msra.mxu0 0.0
    %1158 = vmatprep.subr.mxu0 0.0
    %1159 = vmatpush1.msra.mxu0 0.0
    %1160 = vmatprep.subr.mxu0 0.0
    %1161 = vmatpush1.msra.mxu0 %v1126
    %1162 = vmatprep.subr.mxu0 0.0
    %1163 = vmatpush1.msra.mxu0 %v1125
    %1164 = vmatprep.subr.mxu0 0.0
    %1165 = vmatpush2.msra.mxu0 0.0
    %1166 = vmatprep.subr.mxu0 0.0
    %1167 = vmatpush2.msra.mxu0 0.0
    %1168 = vmatprep.subr.mxu0 0.0
    %1169 = vmatpush2.msra.mxu0 0.0
    %1170 = vmatprep.subr.mxu0 0.0
    %1171 = vmatpush2.msra.mxu0 0.0
    %1172 = vmatprep.subr.mxu0 0.0
    %1173 = vmatpush2.msra.mxu0 0.0
    %1174 = vmatprep.subr.mxu0 0.0
    %1175 = vmatpush2.msra.mxu0 0.0
    %1176 = vmatprep.subr.mxu0 0.0
    %1177 = vmatpush2.msra.mxu0 0.0
    %1178 = vmatprep.subr.mxu0 0.0
    %1179 = vmatpush2.msra.mxu0 0.0
    %1180 = vmatprep.subr.mxu0 0.0
    %1181 = vmatpush2.msra.mxu0 0.0
    %1182 = vmatprep.subr.mxu0 0.0
    %1183 = vmatpush2.msra.mxu0 0.0
    %1184 = vmatprep.subr.mxu0 0.0
    %1185 = vmatpush2.msra.mxu0 0.0
    %1186 = vmatprep.subr.mxu0 0.0
    %1187 = vmatpush2.msra.mxu0 0.0
    %1188 = vmatprep.subr.mxu0 0.0
    %1189 = vmatpush2.msra.mxu0 0.0
    %1190 = vmatprep.subr.mxu0 0.0
    %1191 = vmatpush2.msra.mxu0 0.0
    %1192 = vmatprep.subr.mxu0 0.0
    %1193 = vmatpush2.msra.mxu0 0.0
    %1194 = vmatprep.subr.mxu0 0.0
    %1195 = vmatpush2.msra.mxu0 0.0
    %1196 = vmatprep.mubr.f32.mxu0 0.0
    %1197 = vmatmul.mubr.f32.gmra.mxu0 %v1130
    %v1198 = vpop.f32.mrf.mxu0
    %v1199 = vadd.f32 0.0, %v1198
    %v1200 = vpop.f32.mrf.mxu0
    %1201 = vdwg.mxu0
    %v1202 = vadd.f32 %v1123, %v1199
    %s1203 = scalar_lea.vmem %s5, 96
    %v1204 = vld [vmem:[%s1203] sm:$0xff]
    %v1205 = vld [vmem:[%s1203 + $0x8] sm:$0xff]
    %v1206 = vrot.slane %v727, 6
    %v1207 = vrot.slane %v729, 5
    %v1208 = vsel %vm739, %v1207, %v1206
    %v1209 = vsel %vm686, %v1208, 0
    %1211 = vmatprep.subr.mxu0 0.0
    %1212 = vmatpush1.msra.mxu0 0.0
    %1213 = vmatprep.subr.mxu0 0.0
    %1214 = vmatpush1.msra.mxu0 0.0
    %1215 = vmatprep.subr.mxu0 0.0
    %1216 = vmatpush1.msra.mxu0 0.0
    %1217 = vmatprep.subr.mxu0 0.0
    %1218 = vmatpush1.msra.mxu0 0.0
    %1219 = vmatprep.subr.mxu0 0.0
    %1220 = vmatpush1.msra.mxu0 0.0
    %1221 = vmatprep.subr.mxu0 0.0
    %1222 = vmatpush1.msra.mxu0 0.0
    %1223 = vmatprep.subr.mxu0 0.0
    %1224 = vmatpush1.msra.mxu0 0.0
    %1225 = vmatprep.subr.mxu0 0.0
    %1226 = vmatpush1.msra.mxu0 0.0
    %1227 = vmatprep.subr.mxu0 0.0
    %1228 = vmatpush1.msra.mxu0 0.0
    %1229 = vmatprep.subr.mxu0 0.0
    %1230 = vmatpush1.msra.mxu0 0.0
    %1231 = vmatprep.subr.mxu0 0.0
    %1232 = vmatpush1.msra.mxu0 0.0
    %1233 = vmatprep.subr.mxu0 0.0
    %1234 = vmatpush1.msra.mxu0 0.0
    %1235 = vmatprep.subr.mxu0 0.0
    %1236 = vmatpush1.msra.mxu0 0.0
    %1237 = vmatprep.subr.mxu0 0.0
    %1238 = vmatpush1.msra.mxu0 0.0
    %1239 = vmatprep.subr.mxu0 0.0
    %1240 = vmatpush1.msra.mxu0 %v1205
    %1241 = vmatprep.subr.mxu0 0.0
    %1242 = vmatpush1.msra.mxu0 %v1204
    %1243 = vmatprep.subr.mxu0 0.0
    %1244 = vmatpush2.msra.mxu0 0.0
    %1245 = vmatprep.subr.mxu0 0.0
    %1246 = vmatpush2.msra.mxu0 0.0
    %1247 = vmatprep.subr.mxu0 0.0
    %1248 = vmatpush2.msra.mxu0 0.0
    %1249 = vmatprep.subr.mxu0 0.0
    %1250 = vmatpush2.msra.mxu0 0.0
    %1251 = vmatprep.subr.mxu0 0.0
    %1252 = vmatpush2.msra.mxu0 0.0
    %1253 = vmatprep.subr.mxu0 0.0
    %1254 = vmatpush2.msra.mxu0 0.0
    %1255 = vmatprep.subr.mxu0 0.0
    %1256 = vmatpush2.msra.mxu0 0.0
    %1257 = vmatprep.subr.mxu0 0.0
    %1258 = vmatpush2.msra.mxu0 0.0
    %1259 = vmatprep.subr.mxu0 0.0
    %1260 = vmatpush2.msra.mxu0 0.0
    %1261 = vmatprep.subr.mxu0 0.0
    %1262 = vmatpush2.msra.mxu0 0.0
    %1263 = vmatprep.subr.mxu0 0.0
    %1264 = vmatpush2.msra.mxu0 0.0
    %1265 = vmatprep.subr.mxu0 0.0
    %1266 = vmatpush2.msra.mxu0 0.0
    %1267 = vmatprep.subr.mxu0 0.0
    %1268 = vmatpush2.msra.mxu0 0.0
    %1269 = vmatprep.subr.mxu0 0.0
    %1270 = vmatpush2.msra.mxu0 0.0
    %1271 = vmatprep.subr.mxu0 0.0
    %1272 = vmatpush2.msra.mxu0 0.0
    %1273 = vmatprep.subr.mxu0 0.0
    %1274 = vmatpush2.msra.mxu0 0.0
    %1275 = vmatprep.mubr.f32.mxu0 0.0
    %1276 = vmatmul.mubr.f32.gmra.mxu0 %v1209
    %v1277 = vpop.f32.mrf.mxu0
    %v1278 = vadd.f32 0.0, %v1277
    %v1279 = vpop.f32.mrf.mxu0
    %1280 = vdwg.mxu0
    %v1281 = vadd.f32 %v1202, %v1278
    %s1282 = scalar_lea.vmem %s5, 112
    %v1283 = vld [vmem:[%s1282] sm:$0xff]
    %v1284 = vld [vmem:[%s1282 + $0x8] sm:$0xff]
    %v1285 = vrot.slane %v727, 7
    %v1286 = vrot.slane %v729, 6
    %v1287 = vsel %vm739, %v1286, %v1285
    %v1288 = vsel %vm686, %v1287, 0
    %1290 = vmatprep.subr.mxu0 0.0
    %1291 = vmatpush1.msra.mxu0 0.0
    %1292 = vmatprep.subr.mxu0 0.0
    %1293 = vmatpush1.msra.mxu0 0.0
    %1294 = vmatprep.subr.mxu0 0.0
    %1295 = vmatpush1.msra.mxu0 0.0
    %1296 = vmatprep.subr.mxu0 0.0
    %1297 = vmatpush1.msra.mxu0 0.0
    %1298 = vmatprep.subr.mxu0 0.0
    %1299 = vmatpush1.msra.mxu0 0.0
    %1300 = vmatprep.subr.mxu0 0.0
    %1301 = vmatpush1.msra.mxu0 0.0
    %1302 = vmatprep.subr.mxu0 0.0
    %1303 = vmatpush1.msra.mxu0 0.0
    %1304 = vmatprep.subr.mxu0 0.0
    %1305 = vmatpush1.msra.mxu0 0.0
    %1306 = vmatprep.subr.mxu0 0.0
    %1307 = vmatpush1.msra.mxu0 0.0
    %1308 = vmatprep.subr.mxu0 0.0
    %1309 = vmatpush1.msra.mxu0 0.0
    %1310 = vmatprep.subr.mxu0 0.0
    %1311 = vmatpush1.msra.mxu0 0.0
    %1312 = vmatprep.subr.mxu0 0.0
    %1313 = vmatpush1.msra.mxu0 0.0
    %1314 = vmatprep.subr.mxu0 0.0
    %1315 = vmatpush1.msra.mxu0 0.0
    %1316 = vmatprep.subr.mxu0 0.0
    %1317 = vmatpush1.msra.mxu0 0.0
    %1318 = vmatprep.subr.mxu0 0.0
    %1319 = vmatpush1.msra.mxu0 %v1284
    %1320 = vmatprep.subr.mxu0 0.0
    %1321 = vmatpush1.msra.mxu0 %v1283
    %1322 = vmatprep.subr.mxu0 0.0
    %1323 = vmatpush2.msra.mxu0 0.0
    %1324 = vmatprep.subr.mxu0 0.0
    %1325 = vmatpush2.msra.mxu0 0.0
    %1326 = vmatprep.subr.mxu0 0.0
    %1327 = vmatpush2.msra.mxu0 0.0
    %1328 = vmatprep.subr.mxu0 0.0
    %1329 = vmatpush2.msra.mxu0 0.0
    %1330 = vmatprep.subr.mxu0 0.0
    %1331 = vmatpush2.msra.mxu0 0.0
    %1332 = vmatprep.subr.mxu0 0.0
    %1333 = vmatpush2.msra.mxu0 0.0
    %1334 = vmatprep.subr.mxu0 0.0
    %1335 = vmatpush2.msra.mxu0 0.0
    %1336 = vmatprep.subr.mxu0 0.0
    %1337 = vmatpush2.msra.mxu0 0.0
    %1338 = vmatprep.subr.mxu0 0.0
    %1339 = vmatpush2.msra.mxu0 0.0
    %1340 = vmatprep.subr.mxu0 0.0
    %1341 = vmatpush2.msra.mxu0 0.0
    %1342 = vmatprep.subr.mxu0 0.0
    %1343 = vmatpush2.msra.mxu0 0.0
    %1344 = vmatprep.subr.mxu0 0.0
    %1345 = vmatpush2.msra.mxu0 0.0
    %1346 = vmatprep.subr.mxu0 0.0
    %1347 = vmatpush2.msra.mxu0 0.0
    %1348 = vmatprep.subr.mxu0 0.0
    %1349 = vmatpush2.msra.mxu0 0.0
    %1350 = vmatprep.subr.mxu0 0.0
    %1351 = vmatpush2.msra.mxu0 0.0
    %1352 = vmatprep.subr.mxu0 0.0
    %1353 = vmatpush2.msra.mxu0 0.0
    %1354 = vmatprep.mubr.f32.mxu0 0.0
    %1355 = vmatmul.mubr.f32.gmra.mxu0 %v1288
    %v1356 = vpop.f32.mrf.mxu0
    %v1357 = vadd.f32 0.0, %v1356
    %v1358 = vpop.f32.mrf.mxu0
    %1359 = vdwg.mxu0
    %v1360 = vadd.f32 %v1281, %v1357
    %s1361 = scalar_lea.vmem %s5, 128
    %v1362 = vld [vmem:[%s1361] sm:$0xff]
    %v1363 = vld [vmem:[%s1361 + $0x8] sm:$0xff]
    %v1366 = vrot.slane %v730, 7
    %v1367 = vsel %vm739, %v1366, %v728
    %v1368 = vsel %vm686, %v1367, 0
    %1370 = vmatprep.subr.mxu0 0.0
    %1371 = vmatpush1.msra.mxu0 0.0
    %1372 = vmatprep.subr.mxu0 0.0
    %1373 = vmatpush1.msra.mxu0 0.0
    %1374 = vmatprep.subr.mxu0 0.0
    %1375 = vmatpush1.msra.mxu0 0.0
    %1376 = vmatprep.subr.mxu0 0.0
    %1377 = vmatpush1.msra.mxu0 0.0
    %1378 = vmatprep.subr.mxu0 0.0
    %1379 = vmatpush1.msra.mxu0 0.0
    %1380 = vmatprep.subr.mxu0 0.0
    %1381 = vmatpush1.msra.mxu0 0.0
    %1382 = vmatprep.subr.mxu0 0.0
    %1383 = vmatpush1.msra.mxu0 0.0
    %1384 = vmatprep.subr.mxu0 0.0
    %1385 = vmatpush1.msra.mxu0 0.0
    %1386 = vmatprep.subr.mxu0 0.0
    %1387 = vmatpush1.msra.mxu0 0.0
    %1388 = vmatprep.subr.mxu0 0.0
    %1389 = vmatpush1.msra.mxu0 0.0
    %1390 = vmatprep.subr.mxu0 0.0
    %1391 = vmatpush1.msra.mxu0 0.0
    %1392 = vmatprep.subr.mxu0 0.0
    %1393 = vmatpush1.msra.mxu0 0.0
    %1394 = vmatprep.subr.mxu0 0.0
    %1395 = vmatpush1.msra.mxu0 0.0
    %1396 = vmatprep.subr.mxu0 0.0
    %1397 = vmatpush1.msra.mxu0 0.0
    %1398 = vmatprep.subr.mxu0 0.0
    %1399 = vmatpush1.msra.mxu0 %v1363
    %1400 = vmatprep.subr.mxu0 0.0
    %1401 = vmatpush1.msra.mxu0 %v1362
    %1402 = vmatprep.subr.mxu0 0.0
    %1403 = vmatpush2.msra.mxu0 0.0
    %1404 = vmatprep.subr.mxu0 0.0
    %1405 = vmatpush2.msra.mxu0 0.0
    %1406 = vmatprep.subr.mxu0 0.0
    %1407 = vmatpush2.msra.mxu0 0.0
    %1408 = vmatprep.subr.mxu0 0.0
    %1409 = vmatpush2.msra.mxu0 0.0
    %1410 = vmatprep.subr.mxu0 0.0
    %1411 = vmatpush2.msra.mxu0 0.0
    %1412 = vmatprep.subr.mxu0 0.0
    %1413 = vmatpush2.msra.mxu0 0.0
    %1414 = vmatprep.subr.mxu0 0.0
    %1415 = vmatpush2.msra.mxu0 0.0
    %1416 = vmatprep.subr.mxu0 0.0
    %1417 = vmatpush2.msra.mxu0 0.0
    %1418 = vmatprep.subr.mxu0 0.0
    %1419 = vmatpush2.msra.mxu0 0.0
    %1420 = vmatprep.subr.mxu0 0.0
    %1421 = vmatpush2.msra.mxu0 0.0
    %1422 = vmatprep.subr.mxu0 0.0
    %1423 = vmatpush2.msra.mxu0 0.0
    %1424 = vmatprep.subr.mxu0 0.0
    %1425 = vmatpush2.msra.mxu0 0.0
    %1426 = vmatprep.subr.mxu0 0.0
    %1427 = vmatpush2.msra.mxu0 0.0
    %1428 = vmatprep.subr.mxu0 0.0
    %1429 = vmatpush2.msra.mxu0 0.0
    %1430 = vmatprep.subr.mxu0 0.0
    %1431 = vmatpush2.msra.mxu0 0.0
    %1432 = vmatprep.subr.mxu0 0.0
    %1433 = vmatpush2.msra.mxu0 0.0
    %1434 = vmatprep.mubr.f32.mxu0 0.0
    %1435 = vmatmul.mubr.f32.gmra.mxu0 %v1368
    %v1436 = vpop.f32.mrf.mxu0
    %v1437 = vadd.f32 0.0, %v1436
    %v1438 = vpop.f32.mrf.mxu0
    %1439 = vdwg.mxu0
    %v1440 = vadd.f32 %v1360, %v1437
    %s1441 = scalar_lea.vmem %s5, 144
    %v1442 = vld [vmem:[%s1441] sm:$0xff]
    %v1443 = vld [vmem:[%s1441 + $0x8] sm:$0xff]
    %v1444 = vrot.slane %v728, 1
    %v1445 = vsel %vm739, %v730, %v1444
    %v1446 = vsel %vm686, %v1445, 0
    %1448 = vmatprep.subr.mxu0 0.0
    %1449 = vmatpush1.msra.mxu0 0.0
    %1450 = vmatprep.subr.mxu0 0.0
    %1451 = vmatpush1.msra.mxu0 0.0
    %1452 = vmatprep.subr.mxu0 0.0
    %1453 = vmatpush1.msra.mxu0 0.0
    %1454 = vmatprep.subr.mxu0 0.0
    %1455 = vmatpush1.msra.mxu0 0.0
    %1456 = vmatprep.subr.mxu0 0.0
    %1457 = vmatpush1.msra.mxu0 0.0
    %1458 = vmatprep.subr.mxu0 0.0
    %1459 = vmatpush1.msra.mxu0 0.0
    %1460 = vmatprep.subr.mxu0 0.0
    %1461 = vmatpush1.msra.mxu0 0.0
    %1462 = vmatprep.subr.mxu0 0.0
    %1463 = vmatpush1.msra.mxu0 0.0
    %1464 = vmatprep.subr.mxu0 0.0
    %1465 = vmatpush1.msra.mxu0 0.0
    %1466 = vmatprep.subr.mxu0 0.0
    %1467 = vmatpush1.msra.mxu0 0.0
    %1468 = vmatprep.subr.mxu0 0.0
    %1469 = vmatpush1.msra.mxu0 0.0
    %1470 = vmatprep.subr.mxu0 0.0
    %1471 = vmatpush1.msra.mxu0 0.0
    %1472 = vmatprep.subr.mxu0 0.0
    %1473 = vmatpush1.msra.mxu0 0.0
    %1474 = vmatprep.subr.mxu0 0.0
    %1475 = vmatpush1.msra.mxu0 0.0
    %1476 = vmatprep.subr.mxu0 0.0
    %1477 = vmatpush1.msra.mxu0 %v1443
    %1478 = vmatprep.subr.mxu0 0.0
    %1479 = vmatpush1.msra.mxu0 %v1442
    %1480 = vmatprep.subr.mxu0 0.0
    %1481 = vmatpush2.msra.mxu0 0.0
    %1482 = vmatprep.subr.mxu0 0.0
    %1483 = vmatpush2.msra.mxu0 0.0
    %1484 = vmatprep.subr.mxu0 0.0
    %1485 = vmatpush2.msra.mxu0 0.0
    %1486 = vmatprep.subr.mxu0 0.0
    %1487 = vmatpush2.msra.mxu0 0.0
    %1488 = vmatprep.subr.mxu0 0.0
    %1489 = vmatpush2.msra.mxu0 0.0
    %1490 = vmatprep.subr.mxu0 0.0
    %1491 = vmatpush2.msra.mxu0 0.0
    %1492 = vmatprep.subr.mxu0 0.0
    %1493 = vmatpush2.msra.mxu0 0.0
    %1494 = vmatprep.subr.mxu0 0.0
    %1495 = vmatpush2.msra.mxu0 0.0
    %1496 = vmatprep.subr.mxu0 0.0
    %1497 = vmatpush2.msra.mxu0 0.0
    %1498 = vmatprep.subr.mxu0 0.0
    %1499 = vmatpush2.msra.mxu0 0.0
    %1500 = vmatprep.subr.mxu0 0.0
    %1501 = vmatpush2.msra.mxu0 0.0
    %1502 = vmatprep.subr.mxu0 0.0
    %1503 = vmatpush2.msra.mxu0 0.0
    %1504 = vmatprep.subr.mxu0 0.0
    %1505 = vmatpush2.msra.mxu0 0.0
    %1506 = vmatprep.subr.mxu0 0.0
    %1507 = vmatpush2.msra.mxu0 0.0
    %1508 = vmatprep.subr.mxu0 0.0
    %1509 = vmatpush2.msra.mxu0 0.0
    %1510 = vmatprep.subr.mxu0 0.0
    %1511 = vmatpush2.msra.mxu0 0.0
    %1512 = vmatprep.mubr.f32.mxu0 0.0
    %1513 = vmatmul.mubr.f32.gmra.mxu0 %v1446
    %v1514 = vpop.f32.mrf.mxu0
    %v1515 = vadd.f32 0.0, %v1514
    %v1516 = vpop.f32.mrf.mxu0
    %1517 = vdwg.mxu0
    %v1518 = vadd.f32 %v1440, %v1515
    %s1519 = scalar_lea.vmem %s5, 160
    %v1520 = vld [vmem:[%s1519] sm:$0xff]
    %v1521 = vld [vmem:[%s1519 + $0x8] sm:$0xff]
    %v1522 = vrot.slane %v728, 2
    %v1523 = vrot.slane %v730, 1
    %v1524 = vsel %vm739, %v1523, %v1522
    %v1525 = vsel %vm686, %v1524, 0
    %1527 = vmatprep.subr.mxu0 0.0
    %1528 = vmatpush1.msra.mxu0 0.0
    %1529 = vmatprep.subr.mxu0 0.0
    %1530 = vmatpush1.msra.mxu0 0.0
    %1531 = vmatprep.subr.mxu0 0.0
    %1532 = vmatpush1.msra.mxu0 0.0
    %1533 = vmatprep.subr.mxu0 0.0
    %1534 = vmatpush1.msra.mxu0 0.0
    %1535 = vmatprep.subr.mxu0 0.0
    %1536 = vmatpush1.msra.mxu0 0.0
    %1537 = vmatprep.subr.mxu0 0.0
    %1538 = vmatpush1.msra.mxu0 0.0
    %1539 = vmatprep.subr.mxu0 0.0
    %1540 = vmatpush1.msra.mxu0 0.0
    %1541 = vmatprep.subr.mxu0 0.0
    %1542 = vmatpush1.msra.mxu0 0.0
    %1543 = vmatprep.subr.mxu0 0.0
    %1544 = vmatpush1.msra.mxu0 0.0
    %1545 = vmatprep.subr.mxu0 0.0
    %1546 = vmatpush1.msra.mxu0 0.0
    %1547 = vmatprep.subr.mxu0 0.0
    %1548 = vmatpush1.msra.mxu0 0.0
    %1549 = vmatprep.subr.mxu0 0.0
    %1550 = vmatpush1.msra.mxu0 0.0
    %1551 = vmatprep.subr.mxu0 0.0
    %1552 = vmatpush1.msra.mxu0 0.0
    %1553 = vmatprep.subr.mxu0 0.0
    %1554 = vmatpush1.msra.mxu0 0.0
    %1555 = vmatprep.subr.mxu0 0.0
    %1556 = vmatpush1.msra.mxu0 %v1521
    %1557 = vmatprep.subr.mxu0 0.0
    %1558 = vmatpush1.msra.mxu0 %v1520
    %1559 = vmatprep.subr.mxu0 0.0
    %1560 = vmatpush2.msra.mxu0 0.0
    %1561 = vmatprep.subr.mxu0 0.0
    %1562 = vmatpush2.msra.mxu0 0.0
    %1563 = vmatprep.subr.mxu0 0.0
    %1564 = vmatpush2.msra.mxu0 0.0
    %1565 = vmatprep.subr.mxu0 0.0
    %1566 = vmatpush2.msra.mxu0 0.0
    %1567 = vmatprep.subr.mxu0 0.0
    %1568 = vmatpush2.msra.mxu0 0.0
    %1569 = vmatprep.subr.mxu0 0.0
    %1570 = vmatpush2.msra.mxu0 0.0
    %1571 = vmatprep.subr.mxu0 0.0
    %1572 = vmatpush2.msra.mxu0 0.0
    %1573 = vmatprep.subr.mxu0 0.0
    %1574 = vmatpush2.msra.mxu0 0.0
    %1575 = vmatprep.subr.mxu0 0.0
    %1576 = vmatpush2.msra.mxu0 0.0
    %1577 = vmatprep.subr.mxu0 0.0
    %1578 = vmatpush2.msra.mxu0 0.0
    %1579 = vmatprep.subr.mxu0 0.0
    %1580 = vmatpush2.msra.mxu0 0.0
    %1581 = vmatprep.subr.mxu0 0.0
    %1582 = vmatpush2.msra.mxu0 0.0
    %1583 = vmatprep.subr.mxu0 0.0
    %1584 = vmatpush2.msra.mxu0 0.0
    %1585 = vmatprep.subr.mxu0 0.0
    %1586 = vmatpush2.msra.mxu0 0.0
    %1587 = vmatprep.subr.mxu0 0.0
    %1588 = vmatpush2.msra.mxu0 0.0
    %1589 = vmatprep.subr.mxu0 0.0
    %1590 = vmatpush2.msra.mxu0 0.0
    %1591 = vmatprep.mubr.f32.mxu0 0.0
    %1592 = vmatmul.mubr.f32.gmra.mxu0 %v1525
    %v1593 = vpop.f32.mrf.mxu0
    %v1594 = vadd.f32 0.0, %v1593
    %v1595 = vpop.f32.mrf.mxu0
    %1596 = vdwg.mxu0
    %v1597 = vadd.f32 %v1518, %v1594
    %s1598 = scalar_lea.vmem %s5, 176
    %v1599 = vld [vmem:[%s1598] sm:$0xff]
    %v1600 = vld [vmem:[%s1598 + $0x8] sm:$0xff]
    %v1601 = vrot.slane %v728, 3
    %v1602 = vrot.slane %v730, 2
    %v1603 = vsel %vm739, %v1602, %v1601
    %v1604 = vsel %vm686, %v1603, 0
    %1606 = vmatprep.subr.mxu0 0.0
    %1607 = vmatpush1.msra.mxu0 0.0
    %1608 = vmatprep.subr.mxu0 0.0
    %1609 = vmatpush1.msra.mxu0 0.0
    %1610 = vmatprep.subr.mxu0 0.0
    %1611 = vmatpush1.msra.mxu0 0.0
    %1612 = vmatprep.subr.mxu0 0.0
    %1613 = vmatpush1.msra.mxu0 0.0
    %1614 = vmatprep.subr.mxu0 0.0
    %1615 = vmatpush1.msra.mxu0 0.0
    %1616 = vmatprep.subr.mxu0 0.0
    %1617 = vmatpush1.msra.mxu0 0.0
    %1618 = vmatprep.subr.mxu0 0.0
    %1619 = vmatpush1.msra.mxu0 0.0
    %1620 = vmatprep.subr.mxu0 0.0
    %1621 = vmatpush1.msra.mxu0 0.0
    %1622 = vmatprep.subr.mxu0 0.0
    %1623 = vmatpush1.msra.mxu0 0.0
    %1624 = vmatprep.subr.mxu0 0.0
    %1625 = vmatpush1.msra.mxu0 0.0
    %1626 = vmatprep.subr.mxu0 0.0
    %1627 = vmatpush1.msra.mxu0 0.0
    %1628 = vmatprep.subr.mxu0 0.0
    %1629 = vmatpush1.msra.mxu0 0.0
    %1630 = vmatprep.subr.mxu0 0.0
    %1631 = vmatpush1.msra.mxu0 0.0
    %1632 = vmatprep.subr.mxu0 0.0
    %1633 = vmatpush1.msra.mxu0 0.0
    %1634 = vmatprep.subr.mxu0 0.0
    %1635 = vmatpush1.msra.mxu0 %v1600
    %1636 = vmatprep.subr.mxu0 0.0
    %1637 = vmatpush1.msra.mxu0 %v1599
    %1638 = vmatprep.subr.mxu0 0.0
    %1639 = vmatpush2.msra.mxu0 0.0
    %1640 = vmatprep.subr.mxu0 0.0
    %1641 = vmatpush2.msra.mxu0 0.0
    %1642 = vmatprep.subr.mxu0 0.0
    %1643 = vmatpush2.msra.mxu0 0.0
    %1644 = vmatprep.subr.mxu0 0.0
    %1645 = vmatpush2.msra.mxu0 0.0
    %1646 = vmatprep.subr.mxu0 0.0
    %1647 = vmatpush2.msra.mxu0 0.0
    %1648 = vmatprep.subr.mxu0 0.0
    %1649 = vmatpush2.msra.mxu0 0.0
    %1650 = vmatprep.subr.mxu0 0.0
    %1651 = vmatpush2.msra.mxu0 0.0
    %1652 = vmatprep.subr.mxu0 0.0
    %1653 = vmatpush2.msra.mxu0 0.0
    %1654 = vmatprep.subr.mxu0 0.0
    %1655 = vmatpush2.msra.mxu0 0.0
    %1656 = vmatprep.subr.mxu0 0.0
    %1657 = vmatpush2.msra.mxu0 0.0
    %1658 = vmatprep.subr.mxu0 0.0
    %1659 = vmatpush2.msra.mxu0 0.0
    %1660 = vmatprep.subr.mxu0 0.0
    %1661 = vmatpush2.msra.mxu0 0.0
    %1662 = vmatprep.subr.mxu0 0.0
    %1663 = vmatpush2.msra.mxu0 0.0
    %1664 = vmatprep.subr.mxu0 0.0
    %1665 = vmatpush2.msra.mxu0 0.0
    %1666 = vmatprep.subr.mxu0 0.0
    %1667 = vmatpush2.msra.mxu0 0.0
    %1668 = vmatprep.subr.mxu0 0.0
    %1669 = vmatpush2.msra.mxu0 0.0
    %1670 = vmatprep.mubr.f32.mxu0 0.0
    %1671 = vmatmul.mubr.f32.gmra.mxu0 %v1604
    %v1672 = vpop.f32.mrf.mxu0
    %v1673 = vadd.f32 0.0, %v1672
    %v1674 = vpop.f32.mrf.mxu0
    %1675 = vdwg.mxu0
    %v1676 = vadd.f32 %v1597, %v1673
    %s1677 = scalar_lea.vmem %s5, 192
    %v1678 = vld [vmem:[%s1677] sm:$0xff]
    %v1679 = vld [vmem:[%s1677 + $0x8] sm:$0xff]
    %v1680 = vrot.slane %v728, 4
    %v1681 = vrot.slane %v730, 3
    %v1682 = vsel %vm739, %v1681, %v1680
    %v1683 = vsel %vm686, %v1682, 0
    %1685 = vmatprep.subr.mxu0 0.0
    %1686 = vmatpush1.msra.mxu0 0.0
    %1687 = vmatprep.subr.mxu0 0.0
    %1688 = vmatpush1.msra.mxu0 0.0
    %1689 = vmatprep.subr.mxu0 0.0
    %1690 = vmatpush1.msra.mxu0 0.0
    %1691 = vmatprep.subr.mxu0 0.0
    %1692 = vmatpush1.msra.mxu0 0.0
    %1693 = vmatprep.subr.mxu0 0.0
    %1694 = vmatpush1.msra.mxu0 0.0
    %1695 = vmatprep.subr.mxu0 0.0
    %1696 = vmatpush1.msra.mxu0 0.0
    %1697 = vmatprep.subr.mxu0 0.0
    %1698 = vmatpush1.msra.mxu0 0.0
    %1699 = vmatprep.subr.mxu0 0.0
    %1700 = vmatpush1.msra.mxu0 0.0
    %1701 = vmatprep.subr.mxu0 0.0
    %1702 = vmatpush1.msra.mxu0 0.0
    %1703 = vmatprep.subr.mxu0 0.0
    %1704 = vmatpush1.msra.mxu0 0.0
    %1705 = vmatprep.subr.mxu0 0.0
    %1706 = vmatpush1.msra.mxu0 0.0
    %1707 = vmatprep.subr.mxu0 0.0
    %1708 = vmatpush1.msra.mxu0 0.0
    %1709 = vmatprep.subr.mxu0 0.0
    %1710 = vmatpush1.msra.mxu0 0.0
    %1711 = vmatprep.subr.mxu0 0.0
    %1712 = vmatpush1.msra.mxu0 0.0
    %1713 = vmatprep.subr.mxu0 0.0
    %1714 = vmatpush1.msra.mxu0 %v1679
    %1715 = vmatprep.subr.mxu0 0.0
    %1716 = vmatpush1.msra.mxu0 %v1678
    %1717 = vmatprep.subr.mxu0 0.0
    %1718 = vmatpush2.msra.mxu0 0.0
    %1719 = vmatprep.subr.mxu0 0.0
    %1720 = vmatpush2.msra.mxu0 0.0
    %1721 = vmatprep.subr.mxu0 0.0
    %1722 = vmatpush2.msra.mxu0 0.0
    %1723 = vmatprep.subr.mxu0 0.0
    %1724 = vmatpush2.msra.mxu0 0.0
    %1725 = vmatprep.subr.mxu0 0.0
    %1726 = vmatpush2.msra.mxu0 0.0
    %1727 = vmatprep.subr.mxu0 0.0
    %1728 = vmatpush2.msra.mxu0 0.0
    %1729 = vmatprep.subr.mxu0 0.0
    %1730 = vmatpush2.msra.mxu0 0.0
    %1731 = vmatprep.subr.mxu0 0.0
    %1732 = vmatpush2.msra.mxu0 0.0
    %1733 = vmatprep.subr.mxu0 0.0
    %1734 = vmatpush2.msra.mxu0 0.0
    %1735 = vmatprep.subr.mxu0 0.0
    %1736 = vmatpush2.msra.mxu0 0.0
    %1737 = vmatprep.subr.mxu0 0.0
    %1738 = vmatpush2.msra.mxu0 0.0
    %1739 = vmatprep.subr.mxu0 0.0
    %1740 = vmatpush2.msra.mxu0 0.0
    %1741 = vmatprep.subr.mxu0 0.0
    %1742 = vmatpush2.msra.mxu0 0.0
    %1743 = vmatprep.subr.mxu0 0.0
    %1744 = vmatpush2.msra.mxu0 0.0
    %1745 = vmatprep.subr.mxu0 0.0
    %1746 = vmatpush2.msra.mxu0 0.0
    %1747 = vmatprep.subr.mxu0 0.0
    %1748 = vmatpush2.msra.mxu0 0.0
    %1749 = vmatprep.mubr.f32.mxu0 0.0
    %1750 = vmatmul.mubr.f32.gmra.mxu0 %v1683
    %v1751 = vpop.f32.mrf.mxu0
    %v1752 = vadd.f32 0.0, %v1751
    %v1753 = vpop.f32.mrf.mxu0
    %1754 = vdwg.mxu0
    %v1755 = vadd.f32 %v1676, %v1752
    %s1756 = scalar_lea.vmem %s5, 208
    %v1757 = vld [vmem:[%s1756] sm:$0xff]
    %v1758 = vld [vmem:[%s1756 + $0x8] sm:$0xff]
    %v1759 = vrot.slane %v728, 5
    %v1760 = vrot.slane %v730, 4
    %v1761 = vsel %vm739, %v1760, %v1759
    %v1762 = vsel %vm686, %v1761, 0
    %1764 = vmatprep.subr.mxu0 0.0
    %1765 = vmatpush1.msra.mxu0 0.0
    %1766 = vmatprep.subr.mxu0 0.0
    %1767 = vmatpush1.msra.mxu0 0.0
    %1768 = vmatprep.subr.mxu0 0.0
    %1769 = vmatpush1.msra.mxu0 0.0
    %1770 = vmatprep.subr.mxu0 0.0
    %1771 = vmatpush1.msra.mxu0 0.0
    %1772 = vmatprep.subr.mxu0 0.0
    %1773 = vmatpush1.msra.mxu0 0.0
    %1774 = vmatprep.subr.mxu0 0.0
    %1775 = vmatpush1.msra.mxu0 0.0
    %1776 = vmatprep.subr.mxu0 0.0
    %1777 = vmatpush1.msra.mxu0 0.0
    %1778 = vmatprep.subr.mxu0 0.0
    %1779 = vmatpush1.msra.mxu0 0.0
    %1780 = vmatprep.subr.mxu0 0.0
    %1781 = vmatpush1.msra.mxu0 0.0
    %1782 = vmatprep.subr.mxu0 0.0
    %1783 = vmatpush1.msra.mxu0 0.0
    %1784 = vmatprep.subr.mxu0 0.0
    %1785 = vmatpush1.msra.mxu0 0.0
    %1786 = vmatprep.subr.mxu0 0.0
    %1787 = vmatpush1.msra.mxu0 0.0
    %1788 = vmatprep.subr.mxu0 0.0
    %1789 = vmatpush1.msra.mxu0 0.0
    %1790 = vmatprep.subr.mxu0 0.0
    %1791 = vmatpush1.msra.mxu0 0.0
    %1792 = vmatprep.subr.mxu0 0.0
    %1793 = vmatpush1.msra.mxu0 %v1758
    %1794 = vmatprep.subr.mxu0 0.0
    %1795 = vmatpush1.msra.mxu0 %v1757
    %1796 = vmatprep.subr.mxu0 0.0
    %1797 = vmatpush2.msra.mxu0 0.0
    %1798 = vmatprep.subr.mxu0 0.0
    %1799 = vmatpush2.msra.mxu0 0.0
    %1800 = vmatprep.subr.mxu0 0.0
    %1801 = vmatpush2.msra.mxu0 0.0
    %1802 = vmatprep.subr.mxu0 0.0
    %1803 = vmatpush2.msra.mxu0 0.0
    %1804 = vmatprep.subr.mxu0 0.0
    %1805 = vmatpush2.msra.mxu0 0.0
    %1806 = vmatprep.subr.mxu0 0.0
    %1807 = vmatpush2.msra.mxu0 0.0
    %1808 = vmatprep.subr.mxu0 0.0
    %1809 = vmatpush2.msra.mxu0 0.0
    %1810 = vmatprep.subr.mxu0 0.0
    %1811 = vmatpush2.msra.mxu0 0.0
    %1812 = vmatprep.subr.mxu0 0.0
    %1813 = vmatpush2.msra.mxu0 0.0
    %1814 = vmatprep.subr.mxu0 0.0
    %1815 = vmatpush2.msra.mxu0 0.0
    %1816 = vmatprep.subr.mxu0 0.0
    %1817 = vmatpush2.msra.mxu0 0.0
    %1818 = vmatprep.subr.mxu0 0.0
    %1819 = vmatpush2.msra.mxu0 0.0
    %1820 = vmatprep.subr.mxu0 0.0
    %1821 = vmatpush2.msra.mxu0 0.0
    %1822 = vmatprep.subr.mxu0 0.0
    %1823 = vmatpush2.msra.mxu0 0.0
    %1824 = vmatprep.subr.mxu0 0.0
    %1825 = vmatpush2.msra.mxu0 0.0
    %1826 = vmatprep.subr.mxu0 0.0
    %1827 = vmatpush2.msra.mxu0 0.0
    %1828 = vmatprep.mubr.f32.mxu0 0.0
    %1829 = vmatmul.mubr.f32.gmra.mxu0 %v1762
    %v1830 = vpop.f32.mrf.mxu0
    %v1831 = vadd.f32 0.0, %v1830
    %v1832 = vpop.f32.mrf.mxu0
    %1833 = vdwg.mxu0
    %v1834 = vadd.f32 %v1755, %v1831
    %s1835 = scalar_lea.vmem %s5, 224
    %v1836 = vld [vmem:[%s1835] sm:$0xff]
    %v1837 = vld [vmem:[%s1835 + $0x8] sm:$0xff]
    %v1838 = vrot.slane %v728, 6
    %v1839 = vrot.slane %v730, 5
    %v1840 = vsel %vm739, %v1839, %v1838
    %v1841 = vsel %vm686, %v1840, 0
    %1843 = vmatprep.subr.mxu0 0.0
    %1844 = vmatpush1.msra.mxu0 0.0
    %1845 = vmatprep.subr.mxu0 0.0
    %1846 = vmatpush1.msra.mxu0 0.0
    %1847 = vmatprep.subr.mxu0 0.0
    %1848 = vmatpush1.msra.mxu0 0.0
    %1849 = vmatprep.subr.mxu0 0.0
    %1850 = vmatpush1.msra.mxu0 0.0
    %1851 = vmatprep.subr.mxu0 0.0
    %1852 = vmatpush1.msra.mxu0 0.0
    %1853 = vmatprep.subr.mxu0 0.0
    %1854 = vmatpush1.msra.mxu0 0.0
    %1855 = vmatprep.subr.mxu0 0.0
    %1856 = vmatpush1.msra.mxu0 0.0
    %1857 = vmatprep.subr.mxu0 0.0
    %1858 = vmatpush1.msra.mxu0 0.0
    %1859 = vmatprep.subr.mxu0 0.0
    %1860 = vmatpush1.msra.mxu0 0.0
    %1861 = vmatprep.subr.mxu0 0.0
    %1862 = vmatpush1.msra.mxu0 0.0
    %1863 = vmatprep.subr.mxu0 0.0
    %1864 = vmatpush1.msra.mxu0 0.0
    %1865 = vmatprep.subr.mxu0 0.0
    %1866 = vmatpush1.msra.mxu0 0.0
    %1867 = vmatprep.subr.mxu0 0.0
    %1868 = vmatpush1.msra.mxu0 0.0
    %1869 = vmatprep.subr.mxu0 0.0
    %1870 = vmatpush1.msra.mxu0 0.0
    %1871 = vmatprep.subr.mxu0 0.0
    %1872 = vmatpush1.msra.mxu0 %v1837
    %1873 = vmatprep.subr.mxu0 0.0
    %1874 = vmatpush1.msra.mxu0 %v1836
    %1875 = vmatprep.subr.mxu0 0.0
    %1876 = vmatpush2.msra.mxu0 0.0
    %1877 = vmatprep.subr.mxu0 0.0
    %1878 = vmatpush2.msra.mxu0 0.0
    %1879 = vmatprep.subr.mxu0 0.0
    %1880 = vmatpush2.msra.mxu0 0.0
    %1881 = vmatprep.subr.mxu0 0.0
    %1882 = vmatpush2.msra.mxu0 0.0
    %1883 = vmatprep.subr.mxu0 0.0
    %1884 = vmatpush2.msra.mxu0 0.0
    %1885 = vmatprep.subr.mxu0 0.0
    %1886 = vmatpush2.msra.mxu0 0.0
    %1887 = vmatprep.subr.mxu0 0.0
    %1888 = vmatpush2.msra.mxu0 0.0
    %1889 = vmatprep.subr.mxu0 0.0
    %1890 = vmatpush2.msra.mxu0 0.0
    %1891 = vmatprep.subr.mxu0 0.0
    %1892 = vmatpush2.msra.mxu0 0.0
    %1893 = vmatprep.subr.mxu0 0.0
    %1894 = vmatpush2.msra.mxu0 0.0
    %1895 = vmatprep.subr.mxu0 0.0
    %1896 = vmatpush2.msra.mxu0 0.0
    %1897 = vmatprep.subr.mxu0 0.0
    %1898 = vmatpush2.msra.mxu0 0.0
    %1899 = vmatprep.subr.mxu0 0.0
    %1900 = vmatpush2.msra.mxu0 0.0
    %1901 = vmatprep.subr.mxu0 0.0
    %1902 = vmatpush2.msra.mxu0 0.0
    %1903 = vmatprep.subr.mxu0 0.0
    %1904 = vmatpush2.msra.mxu0 0.0
    %1905 = vmatprep.subr.mxu0 0.0
    %1906 = vmatpush2.msra.mxu0 0.0
    %1907 = vmatprep.mubr.f32.mxu0 0.0
    %1908 = vmatmul.mubr.f32.gmra.mxu0 %v1841
    %v1909 = vpop.f32.mrf.mxu0
    %v1910 = vadd.f32 0.0, %v1909
    %v1911 = vpop.f32.mrf.mxu0
    %1912 = vdwg.mxu0
    %v1913 = vadd.f32 %v1834, %v1910
    %s1914 = scalar_lea.vmem %s5, 240
    %v1915 = vld [vmem:[%s1914] sm:$0xff]
    %v1916 = vld [vmem:[%s1914 + $0x8] sm:$0xff]
    %v1917 = vrot.slane %v728, 7
    %v1918 = vrot.slane %v730, 6
    %v1919 = vsel %vm739, %v1918, %v1917
    %v1920 = vsel %vm686, %v1919, 0
    %1922 = vmatprep.subr.mxu0 0.0
    %1923 = vmatpush1.msra.mxu0 0.0
    %1924 = vmatprep.subr.mxu0 0.0
    %1925 = vmatpush1.msra.mxu0 0.0
    %1926 = vmatprep.subr.mxu0 0.0
    %1927 = vmatpush1.msra.mxu0 0.0
    %1928 = vmatprep.subr.mxu0 0.0
    %1929 = vmatpush1.msra.mxu0 0.0
    %1930 = vmatprep.subr.mxu0 0.0
    %1931 = vmatpush1.msra.mxu0 0.0
    %1932 = vmatprep.subr.mxu0 0.0
    %1933 = vmatpush1.msra.mxu0 0.0
    %1934 = vmatprep.subr.mxu0 0.0
    %1935 = vmatpush1.msra.mxu0 0.0
    %1936 = vmatprep.subr.mxu0 0.0
    %1937 = vmatpush1.msra.mxu0 0.0
    %1938 = vmatprep.subr.mxu0 0.0
    %1939 = vmatpush1.msra.mxu0 0.0
    %1940 = vmatprep.subr.mxu0 0.0
    %1941 = vmatpush1.msra.mxu0 0.0
    %1942 = vmatprep.subr.mxu0 0.0
    %1943 = vmatpush1.msra.mxu0 0.0
    %1944 = vmatprep.subr.mxu0 0.0
    %1945 = vmatpush1.msra.mxu0 0.0
    %1946 = vmatprep.subr.mxu0 0.0
    %1947 = vmatpush1.msra.mxu0 0.0
    %1948 = vmatprep.subr.mxu0 0.0
    %1949 = vmatpush1.msra.mxu0 0.0
    %1950 = vmatprep.subr.mxu0 0.0
    %1951 = vmatpush1.msra.mxu0 %v1916
    %1952 = vmatprep.subr.mxu0 0.0
    %1953 = vmatpush1.msra.mxu0 %v1915
    %1954 = vmatprep.subr.mxu0 0.0
    %1955 = vmatpush2.msra.mxu0 0.0
    %1956 = vmatprep.subr.mxu0 0.0
    %1957 = vmatpush2.msra.mxu0 0.0
    %1958 = vmatprep.subr.mxu0 0.0
    %1959 = vmatpush2.msra.mxu0 0.0
    %1960 = vmatprep.subr.mxu0 0.0
    %1961 = vmatpush2.msra.mxu0 0.0
    %1962 = vmatprep.subr.mxu0 0.0
    %1963 = vmatpush2.msra.mxu0 0.0
    %1964 = vmatprep.subr.mxu0 0.0
    %1965 = vmatpush2.msra.mxu0 0.0
    %1966 = vmatprep.subr.mxu0 0.0
    %1967 = vmatpush2.msra.mxu0 0.0
    %1968 = vmatprep.subr.mxu0 0.0
    %1969 = vmatpush2.msra.mxu0 0.0
    %1970 = vmatprep.subr.mxu0 0.0
    %1971 = vmatpush2.msra.mxu0 0.0
    %1972 = vmatprep.subr.mxu0 0.0
    %1973 = vmatpush2.msra.mxu0 0.0
    %1974 = vmatprep.subr.mxu0 0.0
    %1975 = vmatpush2.msra.mxu0 0.0
    %1976 = vmatprep.subr.mxu0 0.0
    %1977 = vmatpush2.msra.mxu0 0.0
    %1978 = vmatprep.subr.mxu0 0.0
    %1979 = vmatpush2.msra.mxu0 0.0
    %1980 = vmatprep.subr.mxu0 0.0
    %1981 = vmatpush2.msra.mxu0 0.0
    %1982 = vmatprep.subr.mxu0 0.0
    %1983 = vmatpush2.msra.mxu0 0.0
    %1984 = vmatprep.subr.mxu0 0.0
    %1985 = vmatpush2.msra.mxu0 0.0
    %1986 = vmatprep.mubr.f32.mxu0 0.0
    %1987 = vmatmul.mubr.f32.gmra.mxu0 %v1920
    %v1988 = vpop.f32.mrf.mxu0
    %v1989 = vadd.f32 0.0, %v1988
    %v1990 = vpop.f32.mrf.mxu0
    %1991 = vdwg.mxu0
    %v1992 = vadd.f32 %v1913, %v1989
    %s1993 = scalar_lea.vmem %s1, 7
    %v1994 = vld [vmem:[%s1993] sm:$0x1]
    %v1996 = vlaneseq
    %v1997 = vshrl.u32 %v1996, 7
    %v1998 = vsub.s32 0, %v1997
    %v1999 = vrot.slane %v1994, %v1998
    %v2001 = vadd.f32 %v1992, %v1999
    %v2002 = vmax.f32 %v2001, 0.0
    %v2003 = vld [vmem:[%s6] sm:$0xff]
    %v2004 = vld [vmem:[%s6 + $0x8] sm:$0xff]
    %v2005 = vld [vmem:[%s6 + $0x10] sm:$0xff]
    %v2006 = vld [vmem:[%s6 + $0x18] sm:$0xff]
    %s2007 = scalar_lea.vmem %s1, 8
    %v2008 = vld [vmem:[%s2007] sm:$0x1]
    %v2010 = vlaneseq
    %v2011 = vshrl.u32 %v2010, 7
    %v2012 = vsub.s32 0, %v2011
    %v2013 = vrot.slane %v2008, %v2012
    %v2016 = vsel %vm228, %v2002, 0
    %2018 = vmatprep.subr.mxu0 0.0
    %2019 = vmatpush1.msra.mxu0 0.0
    %2020 = vmatprep.subr.mxu0 0.0
    %2021 = vmatpush1.msra.mxu0 0.0
    %2022 = vmatprep.subr.mxu0 0.0
    %2023 = vmatpush1.msra.mxu0 0.0
    %2024 = vmatprep.subr.mxu0 0.0
    %2025 = vmatpush1.msra.mxu0 0.0
    %2026 = vmatprep.subr.mxu0 0.0
    %2027 = vmatpush1.msra.mxu0 0.0
    %2028 = vmatprep.subr.mxu0 0.0
    %2029 = vmatpush1.msra.mxu0 0.0
    %2030 = vmatprep.subr.mxu0 0.0
    %2031 = vmatpush1.msra.mxu0 0.0
    %2032 = vmatprep.subr.mxu0 0.0
    %2033 = vmatpush1.msra.mxu0 0.0
    %2034 = vmatprep.subr.mxu0 0.0
    %2035 = vmatpush1.msra.mxu0 0.0
    %2036 = vmatprep.subr.mxu0 0.0
    %2037 = vmatpush1.msra.mxu0 0.0
    %2038 = vmatprep.subr.mxu0 0.0
    %2039 = vmatpush1.msra.mxu0 0.0
    %2040 = vmatprep.subr.mxu0 0.0
    %2041 = vmatpush1.msra.mxu0 0.0
    %2042 = vmatprep.subr.mxu0 0.0
    %2043 = vmatpush1.msra.mxu0 %v2006
    %2044 = vmatprep.subr.mxu0 0.0
    %2045 = vmatpush1.msra.mxu0 %v2005
    %2046 = vmatprep.subr.mxu0 0.0
    %2047 = vmatpush1.msra.mxu0 %v2004
    %2048 = vmatprep.subr.mxu0 0.0
    %2049 = vmatpush1.msra.mxu0 %v2003
    %2050 = vmatprep.subr.mxu0 0.0
    %2051 = vmatpush2.msra.mxu0 0.0
    %2052 = vmatprep.subr.mxu0 0.0
    %2053 = vmatpush2.msra.mxu0 0.0
    %2054 = vmatprep.subr.mxu0 0.0
    %2055 = vmatpush2.msra.mxu0 0.0
    %2056 = vmatprep.subr.mxu0 0.0
    %2057 = vmatpush2.msra.mxu0 0.0
    %2058 = vmatprep.subr.mxu0 0.0
    %2059 = vmatpush2.msra.mxu0 0.0
    %2060 = vmatprep.subr.mxu0 0.0
    %2061 = vmatpush2.msra.mxu0 0.0
    %2062 = vmatprep.subr.mxu0 0.0
    %2063 = vmatpush2.msra.mxu0 0.0
    %2064 = vmatprep.subr.mxu0 0.0
    %2065 = vmatpush2.msra.mxu0 0.0
    %2066 = vmatprep.subr.mxu0 0.0
    %2067 = vmatpush2.msra.mxu0 0.0
    %2068 = vmatprep.subr.mxu0 0.0
    %2069 = vmatpush2.msra.mxu0 0.0
    %2070 = vmatprep.subr.mxu0 0.0
    %2071 = vmatpush2.msra.mxu0 0.0
    %2072 = vmatprep.subr.mxu0 0.0
    %2073 = vmatpush2.msra.mxu0 0.0
    %2074 = vmatprep.subr.mxu0 0.0
    %2075 = vmatpush2.msra.mxu0 0.0
    %2076 = vmatprep.subr.mxu0 0.0
    %2077 = vmatpush2.msra.mxu0 0.0
    %2078 = vmatprep.subr.mxu0 0.0
    %2079 = vmatpush2.msra.mxu0 0.0
    %2080 = vmatprep.subr.mxu0 0.0
    %2081 = vmatpush2.msra.mxu0 0.0
    %2082 = vmatprep.mubr.f32.mxu0 0.0
    %2083 = vmatmul.mubr.f32.gmra.mxu0 %v2016
    %v2084 = vpop.f32.mrf.mxu0
    %v2085 = vadd.f32 %v2013, %v2084
    %v2086 = vpop.f32.mrf.mxu0
    %2087 = vdwg.mxu0
    %v2088 = vld [vmem:[%s7] sm:$0xff]
    %v2089 = vld [vmem:[%s7 + $0x8] sm:$0xff]
    %v2090 = vld [vmem:[%s7 + $0x10] sm:$0xff]
    %v2091 = vld [vmem:[%s7 + $0x18] sm:$0xff]
    %s2092 = scalar_lea.vmem %s1, 9
    %v2093 = vld [vmem:[%s2092] sm:$0x1]
    %v2095 = vlaneseq
    %v2096 = vshrl.u32 %v2095, 7
    %v2097 = vsub.s32 0, %v2096
    %v2098 = vrot.slane %v2093, %v2097
    %v2101 = vsel %vm228, %v2085, 0
    %2103 = vmatprep.subr.mxu0 0.0
    %2104 = vmatpush1.msra.mxu0 0.0
    %2105 = vmatprep.subr.mxu0 0.0
    %2106 = vmatpush1.msra.mxu0 0.0
    %2107 = vmatprep.subr.mxu0 0.0
    %2108 = vmatpush1.msra.mxu0 0.0
    %2109 = vmatprep.subr.mxu0 0.0
    %2110 = vmatpush1.msra.mxu0 0.0
    %2111 = vmatprep.subr.mxu0 0.0
    %2112 = vmatpush1.msra.mxu0 0.0
    %2113 = vmatprep.subr.mxu0 0.0
    %2114 = vmatpush1.msra.mxu0 0.0
    %2115 = vmatprep.subr.mxu0 0.0
    %2116 = vmatpush1.msra.mxu0 0.0
    %2117 = vmatprep.subr.mxu0 0.0
    %2118 = vmatpush1.msra.mxu0 0.0
    %2119 = vmatprep.subr.mxu0 0.0
    %2120 = vmatpush1.msra.mxu0 0.0
    %2121 = vmatprep.subr.mxu0 0.0
    %2122 = vmatpush1.msra.mxu0 0.0
    %2123 = vmatprep.subr.mxu0 0.0
    %2124 = vmatpush1.msra.mxu0 0.0
    %2125 = vmatprep.subr.mxu0 0.0
    %2126 = vmatpush1.msra.mxu0 0.0
    %2127 = vmatprep.subr.mxu0 0.0
    %2128 = vmatpush1.msra.mxu0 %v2091
    %2129 = vmatprep.subr.mxu0 0.0
    %2130 = vmatpush1.msra.mxu0 %v2090
    %2131 = vmatprep.subr.mxu0 0.0
    %2132 = vmatpush1.msra.mxu0 %v2089
    %2133 = vmatprep.subr.mxu0 0.0
    %2134 = vmatpush1.msra.mxu0 %v2088
    %2135 = vmatprep.subr.mxu0 0.0
    %2136 = vmatpush2.msra.mxu0 0.0
    %2137 = vmatprep.subr.mxu0 0.0
    %2138 = vmatpush2.msra.mxu0 0.0
    %2139 = vmatprep.subr.mxu0 0.0
    %2140 = vmatpush2.msra.mxu0 0.0
    %2141 = vmatprep.subr.mxu0 0.0
    %2142 = vmatpush2.msra.mxu0 0.0
    %2143 = vmatprep.subr.mxu0 0.0
    %2144 = vmatpush2.msra.mxu0 0.0
    %2145 = vmatprep.subr.mxu0 0.0
    %2146 = vmatpush2.msra.mxu0 0.0
    %2147 = vmatprep.subr.mxu0 0.0
    %2148 = vmatpush2.msra.mxu0 0.0
    %2149 = vmatprep.subr.mxu0 0.0
    %2150 = vmatpush2.msra.mxu0 0.0
    %2151 = vmatprep.subr.mxu0 0.0
    %2152 = vmatpush2.msra.mxu0 0.0
    %2153 = vmatprep.subr.mxu0 0.0
    %2154 = vmatpush2.msra.mxu0 0.0
    %2155 = vmatprep.subr.mxu0 0.0
    %2156 = vmatpush2.msra.mxu0 0.0
    %2157 = vmatprep.subr.mxu0 0.0
    %2158 = vmatpush2.msra.mxu0 0.0
    %2159 = vmatprep.subr.mxu0 0.0
    %2160 = vmatpush2.msra.mxu0 0.0
    %2161 = vmatprep.subr.mxu0 0.0
    %2162 = vmatpush2.msra.mxu0 0.0
    %2163 = vmatprep.subr.mxu0 0.0
    %2164 = vmatpush2.msra.mxu0 0.0
    %2165 = vmatprep.subr.mxu0 0.0
    %2166 = vmatpush2.msra.mxu0 0.0
    %2167 = vmatprep.mubr.f32.mxu0 0.0
    %2168 = vmatmul.mubr.f32.gmra.mxu0 %v2101
    %v2169 = vpop.f32.mrf.mxu0
    %v2170 = vadd.f32 %v2098, %v2169
    %v2171 = vpop.f32.mrf.mxu0
    %2172 = vdwg.mxu0
    %vm2173 = vcmask 25600
    %2174 = vst.msk [vmem:[#allocation2] sm:$0x3] %vm2173, %v2170
    // Predicated region
    $region34: #{corelnet_softmax_forward.1} parent=1 // pred_check
      _
    $region35: #{corelnet_softmax_forward.1} parent=1 // pred_check_branch
      %2176 = sbr.rel (0) target = $region37
    $region36: #{corelnet_softmax_forward.1} parent=1 // pred_region
      %s2178 = ssub.s32 32, 32
      %2179 = vsyncadd [#allocation3], %s2178
      %s2181 = sshll.u32 [#allocation2], 4
      %s2182 = int_to_ptr.vmem [resolvable:$true] %s2181
      %2184 = dma.vmem_to_hbm [thread:$0]  %s2182, 32, %s8, [#allocation3]
    $region37: #{corelnet_softmax_forward.1} parent=1 // pred_fallthru
      _
    // Predicated region
    $region38: #{corelnet_softmax_forward.1} parent=1 // pred_check
      _
    $region39: #{corelnet_softmax_forward.1} parent=1 // pred_check_branch
      %2186 = sbr.rel (0) target = $region41
    $region40: #{corelnet_softmax_forward.1} parent=1 // pred_region
      %2187 = dma.done [#allocation3], 32
    $region41: #{corelnet_softmax_forward.1} parent=1 // pred_fallthru
      _
    %2188 = vsyncpa [#allocation3], 1

</llo_original>
